<compile_context>
chip_gen: v5e
topology: v5e:2x2
jax: 0.10.0
libtpu: 0.0.40
codegen_flags: <defaults>
</compile_context>

<pallas_src>
import functools

import jax
import jax.numpy as jnp
from jax.experimental import pallas as pl
from jax.experimental.pallas import tpu as pltpu


def _conv_bn_relu_kernel(x_ref, w_ref, scale_ref, shift_ref, o_ref, *,
                         kh, kw, sh, sw, th, wo):
    """One (batch, Cout-tile, Ho-row-block) per grid step.

    x_ref:     (1, Hp, Wp, Cin)       bf16 zero-padded input image (resident
                                      across the Cout-tile / row-block axes)
    w_ref:     (KH*KW*Cin, CT)        bf16 flattened conv weight tile
    scale_ref: (1, CT)                f32 folded BN scale
    shift_ref: (1, CT)                f32 folded BN shift (incl. conv bias)
    o_ref:     (1, th*Wo, CT)         bf16 output row-block (2-D store; the
                                      (Ho, Wo) reshape happens in the wrapper)
    """
    cin = x_ref.shape[3]
    rows, ct = o_ref.shape[1], o_ref.shape[2]        # rows == th * wo

    # First padded-input row touched by this output row-block.
    r_base = pl.multiple_of(pl.program_id(2) * (th * sh), th * sh)

    # Per-tap accumulation into an f32 accumulator: K = Cin per matmul, no
    # materialized im2col.  (For Cin < 128 one could group the kw taps of a
    # row for K = kw*Cin; kept per-tap here for simplicity.)
    acc = jnp.zeros((rows, ct), jnp.float32)
    for i in range(kh):
        for j in range(kw):
            if sh == 1 and sw == 1:
                tap = x_ref[0, pl.ds(r_base + i, th), pl.ds(j, wo), :]
            else:
                # TODO(synk): strided ref reads are untested in Mosaic.
                tap = x_ref[0, pl.ds(r_base + i, th, stride=sh),
                            pl.ds(j, wo, stride=sw), :]
            t = i * kw + j
            acc += jnp.dot(tap.reshape(rows, cin),
                           w_ref[pl.ds(t * cin, cin), :],
                           preferred_element_type=jnp.float32)

    # Folded BatchNorm (per-channel affine) + ReLU, cast to bf16 at the store.
    y = jnp.maximum(acc * scale_ref[...] + shift_ref[...], 0.0)
    o_ref[0] = y.astype(o_ref.dtype)


def _pick_row_block(ho, wo, max_rows):
    """Largest th | ho with th*wo <= max_rows and (th*wo) % 8 == 0."""
    best = None
    for d in range(1, ho + 1):
        if ho % d:
            continue
        rows = d * wo
        if rows <= max_rows and rows % 8 == 0:
            best = d
    # Fallback: a single full-extent block is always layout-legal.
    return best if best is not None else ho


def basic_conv2d(
    x_nchw,
    weight_oihw,
    conv_bias,
    bn_gamma,
    bn_beta,
    bn_mean,
    bn_var,
    *,
    stride=(1, 1),
    padding=(0, 0),
    eps=1e-3,
    max_block_rows=512,
):
    """Forward of BasicConv2d. Input/output are NCHW (PyTorch convention).

    Output dtype is bfloat16 (f32 accumulation inside the kernel) — inference
    precision; the demo compares against an f32 reference with loose tolerance.
    """
    n, cin, h, w = x_nchw.shape
    cout, cin_w, kh, kw = weight_oihw.shape
    assert cin_w == cin  # TODO(synk): groups > 1 not implemented.
    sh, sw = stride
    ph, pw = padding
    ho = (h + 2 * ph - kh) // sh + 1
    wo = (w + 2 * pw - kw) // sw + 1

    # Cout tiling: no padding for small Cout (avoid padded writeback); 256-wide
    # tiles when possible (v6e/v7x MXU), else 128-wide (native on v5e).
    if cout <= 128:
        ct, cout_pad = cout, cout
    else:
        cout_pad = ((cout + 127) // 128) * 128
        ct = 256 if cout_pad % 256 == 0 else 128
    n_ctile = cout_pad // ct

    # Ho row-block (matmul M = th * wo rows per step).
    th = _pick_row_block(ho, wo, max_block_rows)
    n_htile = ho // th

    # Layout prep in one fused XLA pass: NCHW->NHWC, halo zero-pad, bf16 cast.
    x_nhwc = jnp.pad(
        jnp.transpose(x_nchw, (0, 2, 3, 1)),
        ((0, 0), (ph, ph), (pw, pw), (0, 0)),
    ).astype(jnp.bfloat16)
    hp, wp = h + 2 * ph, w + 2 * pw

    # Weight: OIHW -> HWIO -> (KH*KW*Cin, Cout[_pad]) bf16.
    w_flat = jnp.transpose(weight_oihw, (2, 3, 1, 0)).reshape(kh * kw * cin, cout)
    if cout_pad != cout:
        w_flat = jnp.pad(w_flat, ((0, 0), (0, cout_pad - cout)))
    w_flat = w_flat.astype(jnp.bfloat16)

    # Fold BN (+ optional conv bias) into per-channel scale/shift (f32).
    if conv_bias is None:
        conv_bias = jnp.zeros((cout,), jnp.float32)
    inv_std = (bn_gamma / jnp.sqrt(bn_var + eps)).astype(jnp.float32)
    scale = inv_std
    shift = (bn_beta + (conv_bias - bn_mean) * inv_std).astype(jnp.float32)
    if cout_pad != cout:
        scale = jnp.pad(scale, (0, cout_pad - cout))
        shift = jnp.pad(shift, (0, cout_pad - cout))
    scale = scale.reshape(1, cout_pad)
    shift = shift.reshape(1, cout_pad)

    kernel = functools.partial(
        _conv_bn_relu_kernel, kh=kh, kw=kw, sh=sh, sw=sw, th=th, wo=wo
    )

    # Grid: (batch, Cout tile, Ho row-block).  x's index_map ignores the last
    # two axes, so the padded image stays resident in VMEM across them.
    # TODO(synk): for weight-heavy layers (weight bytes > image bytes) swap to
    #             Cout-tile-outer so the weight tile stays resident instead.
    out2d = pl.pallas_call(
        kernel,
        out_shape=jax.ShapeDtypeStruct((n, ho * wo, cout_pad), jnp.bfloat16),
        grid_spec=pltpu.PrefetchScalarGridSpec(
            num_scalar_prefetch=0,
            grid=(n, n_ctile, n_htile),
            in_specs=[
                pl.BlockSpec((1, hp, wp, cin), lambda b, c, t: (b, 0, 0, 0)),
                pl.BlockSpec((kh * kw * cin, ct), lambda b, c, t: (0, c)),
                pl.BlockSpec((1, ct), lambda b, c, t: (0, c)),
                pl.BlockSpec((1, ct), lambda b, c, t: (0, c)),
            ],
            out_specs=pl.BlockSpec((1, th * wo, ct), lambda b, c, t: (b, t, c)),
        ),
        compiler_params=pltpu.CompilerParams(
            dimension_semantics=("parallel", "parallel", "parallel"),
            # <= 48 MiB so the same sizing is valid on v7x (64 MiB physical);
            # v5e/v6e (128 MiB) could go larger when sweeping block sizes.
            vmem_limit_bytes=48 * 1024 * 1024,
        ),
    )(x_nhwc, w_flat, scale, shift)

    # Free metadata reshape, drop Cout padding (if any), back to NCHW.
    out = out2d.reshape(n, ho, wo, cout_pad)
    if cout_pad != cout:
        out = out[..., :cout]
    return jnp.transpose(out, (0, 3, 1, 2))


def _reference(x_nchw, weight_oihw, conv_bias, gamma, beta, mean, var,
               stride, padding, eps):
    """Pure-JAX f32 reference of the same forward pass (for verification)."""
    y = jax.lax.conv_general_dilated(
        x_nchw,
        weight_oihw,
        window_strides=stride,
        padding=[(padding[0], padding[0]), (padding[1], padding[1])],
        dimension_numbers=("NCHW", "OIHW", "NCHW"),
    )
    y = y + conv_bias.reshape(1, -1, 1, 1)
    y = gamma.reshape(1, -1, 1, 1) * (y - mean.reshape(1, -1, 1, 1)) / jnp.sqrt(
        var.reshape(1, -1, 1, 1) + eps
    ) + beta.reshape(1, -1, 1, 1)
    return jnp.maximum(y, 0.0)


if __name__ == "__main__":
    # Small BasicConv2d instance: in_channels=4, out_channels=8, kernel=3,
    # padding=1, stride=1, groups=1.  Input x: (N=2, C=4, H=16, W=16).
    key = jax.random.PRNGKey(0)
    k_x, k_w, k_b, k_g, k_be, k_m, k_v = jax.random.split(key, 7)

    N, Cin, H, W = 2, 4, 16, 16
    Cout, KH, KW = 8, 3, 3
    stride, padding, eps = (1, 1), (1, 1), 1e-3

    x = jax.random.normal(k_x, (N, Cin, H, W), jnp.float32)
    weight = jax.random.normal(k_w, (Cout, Cin, KH, KW), jnp.float32) * 0.1
    conv_bias = jax.random.normal(k_b, (Cout,), jnp.float32) * 0.1
    gamma = 1.0 + 0.1 * jax.random.normal(k_g, (Cout,), jnp.float32)
    beta = 0.1 * jax.random.normal(k_be, (Cout,), jnp.float32)
    running_mean = 0.1 * jax.random.normal(k_m, (Cout,), jnp.float32)
    running_var = jnp.abs(jax.random.normal(k_v, (Cout,), jnp.float32)) + 0.5

    # max_block_rows=128 so this tiny demo exercises >1 Ho row-block
    # (production shapes would use the default 512+).
    out = basic_conv2d(
        x, weight, conv_bias, gamma, beta, running_mean, running_var,
        stride=stride, padding=padding, eps=eps, max_block_rows=128,
    )
    out = jax.block_until_ready(out)

    ref = _reference(
        x, weight, conv_bias, gamma, beta, running_mean, running_var,
        stride, padding, eps,
    )
    assert out.shape == (N, Cout, H, W), out.shape
    # bf16 matmul inputs + bf16 output -> tolerance loosened vs f32 reference.
    assert jnp.allclose(out.astype(jnp.float32), ref, atol=5e-2, rtol=5e-2), float(
        jnp.max(jnp.abs(out.astype(jnp.float32) - ref))
    )
    print("KERNEL_OK")
</pallas_src>

<mosaic_0001>
module attributes {stable_mosaic.version = 11 : i64} {
  func.func @_conv_bn_relu_kernel(%arg0: i32, %arg1: i32, %arg2: i32, %arg3: memref<1x18x18x4xbf16, #tpu.memory_space<vmem>>, %arg4: memref<36x8xbf16, #tpu.memory_space<vmem>>, %arg5: memref<1x8xf32, #tpu.memory_space<vmem>>, %arg6: memref<1x8xf32, #tpu.memory_space<vmem>>, %arg7: memref<1x128x8xbf16, #tpu.memory_space<vmem>>) attributes {dimension_semantics = [#tpu.dimension_semantics<parallel>, #tpu.dimension_semantics<parallel>, #tpu.dimension_semantics<parallel>], iteration_bounds = array<i64: 2, 1, 2>, scalar_prefetch = 0 : i64, scratch_operands = 0 : i64, tpu.core_type = #tpu.core_type<tc>, window_params = [{transform_indices = @transform_0, window_bounds = array<i64: 1, 18, 18, 4>}, {transform_indices = @transform_1, window_bounds = array<i64: 36, 8>}, {transform_indices = @transform_2, window_bounds = array<i64: 1, 8>}, {transform_indices = @transform_3, window_bounds = array<i64: 1, 8>}, {transform_indices = @transform_4, window_bounds = array<i64: 1, 128, 8>}]} {
    %c8_i32 = arith.constant 8 : i32
    %0 = arith.muli %arg2, %c8_i32 : i32
    %1 = tpu.assume_multiple %0, 8 : i32
    %cst = arith.constant 0.000000e+00 : f32
    %2 = vector.broadcast %cst : f32 to vector<128x8xf32>
    %c0_i32 = arith.constant 0 : i32
    %3 = arith.addi %1, %c0_i32 : i32
    %c0 = arith.constant 0 : index
    %4 = arith.index_cast %3 : i32 to index
    %c0_0 = arith.constant 0 : index
    %c0_1 = arith.constant 0 : index
    %5 = vector.load %arg3[%c0, %4, %c0_0, %c0_1] : memref<1x18x18x4xbf16, #tpu.memory_space<vmem>>, vector<1x8x16x4xbf16>
    %6 = vector.shape_cast %5 : vector<1x8x16x4xbf16> to vector<8x16x4xbf16>
    %7 = vector.shape_cast %6 : vector<8x16x4xbf16> to vector<128x4xbf16>
    %c0_2 = arith.constant 0 : index
    %c0_3 = arith.constant 0 : index
    %8 = vector.load %arg4[%c0_2, %c0_3] : memref<36x8xbf16, #tpu.memory_space<vmem>>, vector<4x8xbf16>
    %cst_4 = arith.constant dense<0.000000e+00> : vector<128x8xf32>
    %9 = tpu.matmul %7, %8, %cst_4 {dimension_numbers = #tpu.dot_dimension_numbers<[1], [0], [0], [1], [0, 0, 1, 1], [], []>} : vector<128x4xbf16>, vector<4x8xbf16>, vector<128x8xf32> -> vector<128x8xf32>
    %10 = arith.addf %2, %9 : vector<128x8xf32>
    %c0_i32_5 = arith.constant 0 : i32
    %11 = arith.addi %1, %c0_i32_5 : i32
    %c0_6 = arith.constant 0 : index
    %12 = arith.index_cast %11 : i32 to index
    %c1 = arith.constant 1 : index
    %c0_7 = arith.constant 0 : index
    %13 = vector.load %arg3[%c0_6, %12, %c1, %c0_7] : memref<1x18x18x4xbf16, #tpu.memory_space<vmem>>, vector<1x8x16x4xbf16>
    %14 = vector.shape_cast %13 : vector<1x8x16x4xbf16> to vector<8x16x4xbf16>
    %15 = vector.shape_cast %14 : vector<8x16x4xbf16> to vector<128x4xbf16>
    %c4 = arith.constant 4 : index
    %c0_8 = arith.constant 0 : index
    %16 = vector.load %arg4[%c4, %c0_8] : memref<36x8xbf16, #tpu.memory_space<vmem>>, vector<4x8xbf16>
    %cst_9 = arith.constant dense<0.000000e+00> : vector<128x8xf32>
    %17 = tpu.matmul %15, %16, %cst_9 {dimension_numbers = #tpu.dot_dimension_numbers<[1], [0], [0], [1], [0, 0, 1, 1], [], []>} : vector<128x4xbf16>, vector<4x8xbf16>, vector<128x8xf32> -> vector<128x8xf32>
    %18 = arith.addf %10, %17 : vector<128x8xf32>
    %c0_i32_10 = arith.constant 0 : i32
    %19 = arith.addi %1, %c0_i32_10 : i32
    %c0_11 = arith.constant 0 : index
    %20 = arith.index_cast %19 : i32 to index
    %c2 = arith.constant 2 : index
    %c0_12 = arith.constant 0 : index
    %21 = vector.load %arg3[%c0_11, %20, %c2, %c0_12] : memref<1x18x18x4xbf16, #tpu.memory_space<vmem>>, vector<1x8x16x4xbf16>
    %22 = vector.shape_cast %21 : vector<1x8x16x4xbf16> to vector<8x16x4xbf16>
    %23 = vector.shape_cast %22 : vector<8x16x4xbf16> to vector<128x4xbf16>
    %c8 = arith.constant 8 : index
    %c0_13 = arith.constant 0 : index
    %24 = vector.load %arg4[%c8, %c0_13] : memref<36x8xbf16, #tpu.memory_space<vmem>>, vector<4x8xbf16>
    %cst_14 = arith.constant dense<0.000000e+00> : vector<128x8xf32>
    %25 = tpu.matmul %23, %24, %cst_14 {dimension_numbers = #tpu.dot_dimension_numbers<[1], [0], [0], [1], [0, 0, 1, 1], [], []>} : vector<128x4xbf16>, vector<4x8xbf16>, vector<128x8xf32> -> vector<128x8xf32>
    %26 = arith.addf %18, %25 : vector<128x8xf32>
    %c1_i32 = arith.constant 1 : i32
    %27 = arith.addi %1, %c1_i32 : i32
    %c0_15 = arith.constant 0 : index
    %28 = arith.index_cast %27 : i32 to index
    %c0_16 = arith.constant 0 : index
    %c0_17 = arith.constant 0 : index
    %29 = vector.load %arg3[%c0_15, %28, %c0_16, %c0_17] : memref<1x18x18x4xbf16, #tpu.memory_space<vmem>>, vector<1x8x16x4xbf16>
    %30 = vector.shape_cast %29 : vector<1x8x16x4xbf16> to vector<8x16x4xbf16>
    %31 = vector.shape_cast %30 : vector<8x16x4xbf16> to vector<128x4xbf16>
    %c12 = arith.constant 12 : index
    %c0_18 = arith.constant 0 : index
    %32 = vector.load %arg4[%c12, %c0_18] : memref<36x8xbf16, #tpu.memory_space<vmem>>, vector<4x8xbf16>
    %cst_19 = arith.constant dense<0.000000e+00> : vector<128x8xf32>
    %33 = tpu.matmul %31, %32, %cst_19 {dimension_numbers = #tpu.dot_dimension_numbers<[1], [0], [0], [1], [0, 0, 1, 1], [], []>} : vector<128x4xbf16>, vector<4x8xbf16>, vector<128x8xf32> -> vector<128x8xf32>
    %34 = arith.addf %26, %33 : vector<128x8xf32>
    %c1_i32_20 = arith.constant 1 : i32
    %35 = arith.addi %1, %c1_i32_20 : i32
    %c0_21 = arith.constant 0 : index
    %36 = arith.index_cast %35 : i32 to index
    %c1_22 = arith.constant 1 : index
    %c0_23 = arith.constant 0 : index
    %37 = vector.load %arg3[%c0_21, %36, %c1_22, %c0_23] : memref<1x18x18x4xbf16, #tpu.memory_space<vmem>>, vector<1x8x16x4xbf16>
    %38 = vector.shape_cast %37 : vector<1x8x16x4xbf16> to vector<8x16x4xbf16>
    %39 = vector.shape_cast %38 : vector<8x16x4xbf16> to vector<128x4xbf16>
    %c16 = arith.constant 16 : index
    %c0_24 = arith.constant 0 : index
    %40 = vector.load %arg4[%c16, %c0_24] : memref<36x8xbf16, #tpu.memory_space<vmem>>, vector<4x8xbf16>
    %cst_25 = arith.constant dense<0.000000e+00> : vector<128x8xf32>
    %41 = tpu.matmul %39, %40, %cst_25 {dimension_numbers = #tpu.dot_dimension_numbers<[1], [0], [0], [1], [0, 0, 1, 1], [], []>} : vector<128x4xbf16>, vector<4x8xbf16>, vector<128x8xf32> -> vector<128x8xf32>
    %42 = arith.addf %34, %41 : vector<128x8xf32>
    %c1_i32_26 = arith.constant 1 : i32
    %43 = arith.addi %1, %c1_i32_26 : i32
    %c0_27 = arith.constant 0 : index
    %44 = arith.index_cast %43 : i32 to index
    %c2_28 = arith.constant 2 : index
    %c0_29 = arith.constant 0 : index
    %45 = vector.load %arg3[%c0_27, %44, %c2_28, %c0_29] : memref<1x18x18x4xbf16, #tpu.memory_space<vmem>>, vector<1x8x16x4xbf16>
    %46 = vector.shape_cast %45 : vector<1x8x16x4xbf16> to vector<8x16x4xbf16>
    %47 = vector.shape_cast %46 : vector<8x16x4xbf16> to vector<128x4xbf16>
    %c20 = arith.constant 20 : index
    %c0_30 = arith.constant 0 : index
    %48 = vector.load %arg4[%c20, %c0_30] : memref<36x8xbf16, #tpu.memory_space<vmem>>, vector<4x8xbf16>
    %cst_31 = arith.constant dense<0.000000e+00> : vector<128x8xf32>
    %49 = tpu.matmul %47, %48, %cst_31 {dimension_numbers = #tpu.dot_dimension_numbers<[1], [0], [0], [1], [0, 0, 1, 1], [], []>} : vector<128x4xbf16>, vector<4x8xbf16>, vector<128x8xf32> -> vector<128x8xf32>
    %50 = arith.addf %42, %49 : vector<128x8xf32>
    %c2_i32 = arith.constant 2 : i32
    %51 = arith.addi %1, %c2_i32 : i32
    %c0_32 = arith.constant 0 : index
    %52 = arith.index_cast %51 : i32 to index
    %c0_33 = arith.constant 0 : index
    %c0_34 = arith.constant 0 : index
    %53 = vector.load %arg3[%c0_32, %52, %c0_33, %c0_34] : memref<1x18x18x4xbf16, #tpu.memory_space<vmem>>, vector<1x8x16x4xbf16>
    %54 = vector.shape_cast %53 : vector<1x8x16x4xbf16> to vector<8x16x4xbf16>
    %55 = vector.shape_cast %54 : vector<8x16x4xbf16> to vector<128x4xbf16>
    %c24 = arith.constant 24 : index
    %c0_35 = arith.constant 0 : index
    %56 = vector.load %arg4[%c24, %c0_35] : memref<36x8xbf16, #tpu.memory_space<vmem>>, vector<4x8xbf16>
    %cst_36 = arith.constant dense<0.000000e+00> : vector<128x8xf32>
    %57 = tpu.matmul %55, %56, %cst_36 {dimension_numbers = #tpu.dot_dimension_numbers<[1], [0], [0], [1], [0, 0, 1, 1], [], []>} : vector<128x4xbf16>, vector<4x8xbf16>, vector<128x8xf32> -> vector<128x8xf32>
    %58 = arith.addf %50, %57 : vector<128x8xf32>
    %c2_i32_37 = arith.constant 2 : i32
    %59 = arith.addi %1, %c2_i32_37 : i32
    %c0_38 = arith.constant 0 : index
    %60 = arith.index_cast %59 : i32 to index
    %c1_39 = arith.constant 1 : index
    %c0_40 = arith.constant 0 : index
    %61 = vector.load %arg3[%c0_38, %60, %c1_39, %c0_40] : memref<1x18x18x4xbf16, #tpu.memory_space<vmem>>, vector<1x8x16x4xbf16>
    %62 = vector.shape_cast %61 : vector<1x8x16x4xbf16> to vector<8x16x4xbf16>
    %63 = vector.shape_cast %62 : vector<8x16x4xbf16> to vector<128x4xbf16>
    %c28 = arith.constant 28 : index
    %c0_41 = arith.constant 0 : index
    %64 = vector.load %arg4[%c28, %c0_41] : memref<36x8xbf16, #tpu.memory_space<vmem>>, vector<4x8xbf16>
    %cst_42 = arith.constant dense<0.000000e+00> : vector<128x8xf32>
    %65 = tpu.matmul %63, %64, %cst_42 {dimension_numbers = #tpu.dot_dimension_numbers<[1], [0], [0], [1], [0, 0, 1, 1], [], []>} : vector<128x4xbf16>, vector<4x8xbf16>, vector<128x8xf32> -> vector<128x8xf32>
    %66 = arith.addf %58, %65 : vector<128x8xf32>
    %c2_i32_43 = arith.constant 2 : i32
    %67 = arith.addi %1, %c2_i32_43 : i32
    %c0_44 = arith.constant 0 : index
    %68 = arith.index_cast %67 : i32 to index
    %c2_45 = arith.constant 2 : index
    %c0_46 = arith.constant 0 : index
    %69 = vector.load %arg3[%c0_44, %68, %c2_45, %c0_46] : memref<1x18x18x4xbf16, #tpu.memory_space<vmem>>, vector<1x8x16x4xbf16>
    %70 = vector.shape_cast %69 : vector<1x8x16x4xbf16> to vector<8x16x4xbf16>
    %71 = vector.shape_cast %70 : vector<8x16x4xbf16> to vector<128x4xbf16>
    %c32 = arith.constant 32 : index
    %c0_47 = arith.constant 0 : index
    %72 = vector.load %arg4[%c32, %c0_47] : memref<36x8xbf16, #tpu.memory_space<vmem>>, vector<4x8xbf16>
    %cst_48 = arith.constant dense<0.000000e+00> : vector<128x8xf32>
    %73 = tpu.matmul %71, %72, %cst_48 {dimension_numbers = #tpu.dot_dimension_numbers<[1], [0], [0], [1], [0, 0, 1, 1], [], []>} : vector<128x4xbf16>, vector<4x8xbf16>, vector<128x8xf32> -> vector<128x8xf32>
    %74 = arith.addf %66, %73 : vector<128x8xf32>
    %c0_49 = arith.constant 0 : index
    %c0_50 = arith.constant 0 : index
    %75 = vector.load %arg5[%c0_49, %c0_50] : memref<1x8xf32, #tpu.memory_space<vmem>>, vector<1x8xf32>
    %76 = vector.broadcast %75 : vector<1x8xf32> to vector<128x8xf32>
    %77 = arith.mulf %74, %76 : vector<128x8xf32>
    %c0_51 = arith.constant 0 : index
    %c0_52 = arith.constant 0 : index
    %78 = vector.load %arg6[%c0_51, %c0_52] : memref<1x8xf32, #tpu.memory_space<vmem>>, vector<1x8xf32>
    %79 = vector.broadcast %78 : vector<1x8xf32> to vector<128x8xf32>
    %80 = arith.addf %77, %79 : vector<128x8xf32>
    %cst_53 = arith.constant 0.000000e+00 : f32
    %81 = vector.broadcast %cst_53 : f32 to vector<128x8xf32>
    %82 = arith.maximumf %80, %81 : vector<128x8xf32>
    %83 = arith.truncf %82 : vector<128x8xf32> to vector<128x8xbf16>
    %c0_54 = arith.constant 0 : index
    %c0_55 = arith.constant 0 : index
    %c0_56 = arith.constant 0 : index
    %84 = vector.load %arg7[%c0_54, %c0_55, %c0_56] : memref<1x128x8xbf16, #tpu.memory_space<vmem>>, vector<1x128x8xbf16>
    %85 = vector.shape_cast %84 : vector<1x128x8xbf16> to vector<128x8xbf16>
    %86 = vector.shape_cast %83 : vector<128x8xbf16> to vector<1x128x8xbf16>
    tpu.vector_store %arg7[%c0_54, %c0_55, %c0_56], %86 {strides = array<i32>} : memref<1x128x8xbf16, #tpu.memory_space<vmem>>, vector<1x128x8xbf16>,
    return
  }
  func.func @transform_0(%arg0: i32, %arg1: i32, %arg2: i32) -> (i32, i32, i32, i32) {
    %c0_i32 = arith.constant 0 : i32
    %c0_i32_0 = arith.constant 0 : i32
    %c0_i32_1 = arith.constant 0 : i32
    %c0_i32_2 = arith.constant 0 : i32
    return %arg0, %c0_i32, %c0_i32_0, %c0_i32_1 : i32, i32, i32, i32
  }
  func.func @transform_1(%arg0: i32, %arg1: i32, %arg2: i32) -> (i32, i32) {
    %c0_i32 = arith.constant 0 : i32
    %c0_i32_0 = arith.constant 0 : i32
    return %c0_i32, %arg1 : i32, i32
  }
  func.func @transform_2(%arg0: i32, %arg1: i32, %arg2: i32) -> (i32, i32) {
    %c0_i32 = arith.constant 0 : i32
    %c0_i32_0 = arith.constant 0 : i32
    return %c0_i32, %arg1 : i32, i32
  }
  func.func @transform_3(%arg0: i32, %arg1: i32, %arg2: i32) -> (i32, i32) {
    %c0_i32 = arith.constant 0 : i32
    %c0_i32_0 = arith.constant 0 : i32
    return %c0_i32, %arg1 : i32, i32
  }
  func.func @transform_4(%arg0: i32, %arg1: i32, %arg2: i32) -> (i32, i32, i32) {
    %c0_i32 = arith.constant 0 : i32
    return %arg0, %arg2, %arg1 : i32, i32, i32
  }
}

</mosaic_0001>

<llo_original>
// kernel: tpu_custom_call.1
$region0: #{tpu_custom_call.1}
  #allocation0 [shape = 'u32[]', space=smem, size = 0x4, offset = 0x4, fixed_abs, tag = 'smem constant byte address 0x4 - core index']
  #allocation1 [shape = 'u32[72,128]{1,0:T(1,128)}', space=vmem, size = 0x9000, scoped, tag = 'internal scratch']
  %s0 = inlined_call_operand.vmem [shape: bf16[2,18,18,4], index: 0, kind: input, shape index: {}]
  %s1 = inlined_call_operand.vmem [shape: bf16[36,8], index: 1, kind: input, shape index: {}]
  %s2 = inlined_call_operand.vmem [shape: f32[1,8], index: 2, kind: input, shape index: {}]
  %s3 = inlined_call_operand.vmem [shape: f32[1,8], index: 3, kind: input, shape index: {}]
  %s4 = inlined_call_operand.vmem [shape: bf16[2,256,8], index: 4, kind: output, shape index: {}]
  %s5 = sld [smem:[#allocation0]]
  $region49: #{tpu_custom_call.1} parent=0
    _
  %s7 = ssub.s32 1, %s5
  %s8 = scalar_select 0, %s7, %s5
  loop: start=0, step=1, limit=6
  $region2: #{tpu_custom_call.1} parent=0 // loop_pre_header
    _
  $region3: #{tpu_custom_call.1} parent=0 // loop_header
    %s10 = sphi 0, %s14
    %p11 = scmp.ge.s32.totalorder %s10, 6
    %s17 = sphi 0, %s36
    %s18 = sphi 0, %s32
    %s19 = sphi 0, %s28
    %s20 = sphi 0, %s17
    %s21 = sphi 0, %s18
    %s22 = sphi 0, %s19
    %s23 = sphi 0, %s20
    %s24 = sphi 0, %s21
    %s25 = sphi 0, %s22
    %s39 = sphi 0, %s41
    %s42 = sphi 0, %s39
    %s43 = sphi 0, %s42
    %s59 = sphi 0, %s43
    %s65 = sphi 0, %s67
    %s68 = sphi 0, %s65
    %s69 = sphi 0, %s68
    %s85 = sphi 0, %s69
    %s91 = sphi 0, %s93
    %s94 = sphi 0, %s91
    %s95 = sphi 0, %s94
    %s111 = sphi 0, %s95
    %s117 = sphi 0, %s119
    %s120 = sphi 0, %s117
    %s121 = sphi 0, %s120
    %s137 = sphi 0, %s121
    %s147 = sphi 0, %s149
    %s150 = sphi 0, %s147
    %s151 = sphi 0, %s150
    %s167 = sphi 0, %s151
  $region4: #{tpu_custom_call.1} parent=0 // loop_header_branch
    %13 = sbr.rel (%p11) target = $region8
  $region5: #{tpu_custom_call.1} parent=0 // loop_body
    %s15 = ssub.s32 %s10, 1
    %s16 = ssub.s32 %s10, 2
    %s26 = sadd.s32 1, %s19
    %p27 = scmp.ge.s32.totalorder %s26, 2
    %s28 = scalar_select %p27, 0, %s26
    %s29 = sadd.s32 1, %s18
    %s30 = scalar_select %p27, %s29, %s18
    %p31 = scmp.ge.s32.totalorder %s30, 1
    %s32 = scalar_select %p31, 0, %s30
    %s33 = sadd.s32 1, %s17
    %s34 = scalar_select %p31, %s33, %s17
    %p35 = scmp.ge.s32.totalorder %s34, 2
    %s36 = scalar_select %p35, 0, %s34
    %s37 = ssub.s32 %s17, %s36
    %p38 = scmp.eq.s32.totalorder %s37, 0
    %s40 = sadd.s32 %s39, 1
    %s41 = scalar_select %p38, %s39, %s40
    %p44 = pneg %p38
    %p45 = scmp.eq.s32.totalorder %s10, 3
    %p46 = por %p44, %p45
    %p47 = scmp.ne.s32.totalorder %s39, %s42
    %p48 = scmp.eq.s32.totalorder %s10, 0
    %p49 = por %p47, %p48
    %p50 = scmp.ne.s32.totalorder %s39, %s42
    %p51 = scmp.eq.s32.totalorder %s15, 3
    %p52 = por %p50, %p51
    %p53 = scmp.ne.s32.totalorder %s42, %s43
    %p54 = scmp.eq.s32.totalorder %s15, 0
    %p55 = por %p53, %p54
    %p56 = scmp.ne.s32.totalorder %s42, %s43
    %p57 = scmp.eq.s32.totalorder %s16, 3
    %p58 = por %p56, %p57
    %p60 = scmp.ne.s32.totalorder %s43, %s59
    %p61 = scmp.eq.s32.totalorder %s16, 0
    %p62 = por %p60, %p61
    %s63 = ssub.s32 %s18, %s32
    %p64 = scmp.eq.s32.totalorder %s63, 0
    %s66 = sadd.s32 %s65, 1
    %s67 = scalar_select %p64, %s65, %s66
    %p70 = pneg %p64
    %p71 = scmp.eq.s32.totalorder %s10, 3
    %p72 = por %p70, %p71
    %p73 = scmp.ne.s32.totalorder %s65, %s68
    %p74 = scmp.eq.s32.totalorder %s10, 0
    %p75 = por %p73, %p74
    %p76 = scmp.ne.s32.totalorder %s65, %s68
    %p77 = scmp.eq.s32.totalorder %s15, 3
    %p78 = por %p76, %p77
    %p79 = scmp.ne.s32.totalorder %s68, %s69
    %p80 = scmp.eq.s32.totalorder %s15, 0
    %p81 = por %p79, %p80
    %p82 = scmp.ne.s32.totalorder %s68, %s69
    %p83 = scmp.eq.s32.totalorder %s16, 3
    %p84 = por %p82, %p83
    %p86 = scmp.ne.s32.totalorder %s69, %s85
    %p87 = scmp.eq.s32.totalorder %s16, 0
    %p88 = por %p86, %p87
    %s89 = ssub.s32 %s18, %s32
    %p90 = scmp.eq.s32.totalorder %s89, 0
    %s92 = sadd.s32 %s91, 1
    %s93 = scalar_select %p90, %s91, %s92
    %p96 = pneg %p90
    %p97 = scmp.eq.s32.totalorder %s10, 3
    %p98 = por %p96, %p97
    %p99 = scmp.ne.s32.totalorder %s91, %s94
    %p100 = scmp.eq.s32.totalorder %s10, 0
    %p101 = por %p99, %p100
    %p102 = scmp.ne.s32.totalorder %s91, %s94
    %p103 = scmp.eq.s32.totalorder %s15, 3
    %p104 = por %p102, %p103
    %p105 = scmp.ne.s32.totalorder %s94, %s95
    %p106 = scmp.eq.s32.totalorder %s15, 0
    %p107 = por %p105, %p106
    %p108 = scmp.ne.s32.totalorder %s94, %s95
    %p109 = scmp.eq.s32.totalorder %s16, 3
    %p110 = por %p108, %p109
    %p112 = scmp.ne.s32.totalorder %s95, %s111
    %p113 = scmp.eq.s32.totalorder %s16, 0
    %p114 = por %p112, %p113
    %s115 = ssub.s32 %s18, %s32
    %p116 = scmp.eq.s32.totalorder %s115, 0
    %s118 = sadd.s32 %s117, 1
    %s119 = scalar_select %p116, %s117, %s118
    %p122 = pneg %p116
    %p123 = scmp.eq.s32.totalorder %s10, 3
    %p124 = por %p122, %p123
    %p125 = scmp.ne.s32.totalorder %s117, %s120
    %p126 = scmp.eq.s32.totalorder %s10, 0
    %p127 = por %p125, %p126
    %p128 = scmp.ne.s32.totalorder %s117, %s120
    %p129 = scmp.eq.s32.totalorder %s15, 3
    %p130 = por %p128, %p129
    %p131 = scmp.ne.s32.totalorder %s120, %s121
    %p132 = scmp.eq.s32.totalorder %s15, 0
    %p133 = por %p131, %p132
    %p134 = scmp.ne.s32.totalorder %s120, %s121
    %p135 = scmp.eq.s32.totalorder %s16, 3
    %p136 = por %p134, %p135
    %p138 = scmp.ne.s32.totalorder %s121, %s137
    %p139 = scmp.eq.s32.totalorder %s16, 0
    %p140 = por %p138, %p139
    %s141 = ssub.s32 %s17, %s36
    %s142 = ssub.s32 %s19, %s28
    %s143 = sor.u32 %s141, %s142
    %s144 = ssub.s32 %s18, %s32
    %s145 = sor.u32 %s143, %s144
    %p146 = scmp.eq.s32.totalorder %s145, 0
    %s148 = sadd.s32 %s147, 1
    %s149 = scalar_select %p146, %s147, %s148
    %p152 = pneg %p146
    %p153 = scmp.eq.s32.totalorder %s10, 3
    %p154 = por %p152, %p153
    %p155 = scmp.ne.s32.totalorder %s147, %s150
    %p156 = scmp.eq.s32.totalorder %s10, 0
    %p157 = por %p155, %p156
    %p158 = scmp.ne.s32.totalorder %s147, %s150
    %p159 = scmp.eq.s32.totalorder %s15, 3
    %p160 = por %p158, %p159
    %p161 = scmp.ne.s32.totalorder %s150, %s151
    %p162 = scmp.eq.s32.totalorder %s15, 0
    %p163 = por %p161, %p162
    %p164 = scmp.ne.s32.totalorder %s150, %s151
    %p165 = scmp.eq.s32.totalorder %s16, 3
    %p166 = por %p164, %p165
    %p168 = scmp.ne.s32.totalorder %s151, %s167
    %p169 = scmp.eq.s32.totalorder %s16, 0
    %p170 = por %p168, %p169
    %p171 = scmp.le.s32.totalorder 1, %s10
    %p172 = scmp.lt.s32.totalorder %s10, 5
    %p173 = pnand %p171, %p172
    %p174 = pneg %p173
    // Predicated region
    $region9: #{tpu_custom_call.1} parent=5 // pred_check
      _
    $region10: #{tpu_custom_call.1} parent=5 // pred_check_branch
      %176 = sbr.rel (%p173) target = $region12
    $region11: #{tpu_custom_call.1} parent=5 // pred_region
      %s177 = ssub.s32 %s10, 1
      // Predicated region
      $region13: #{tpu_custom_call.1} parent=11 // pred_check
        %p178 = pneg %p81
      $region14: #{tpu_custom_call.1} parent=11 // pred_check_branch
        %180 = sbr.rel (%p178) target = $region16
      $region15: #{tpu_custom_call.1} parent=11 // pred_region
        %p181 = scmp.lt.s32.totalorder %s21, 0
        %s182 = scalar_select %p181, %s21, 0
        %s183 = smul.addr %s182, 4
        %s184 = scalar_lea.vmem %s1, %s183
      $region16: #{tpu_custom_call.1} parent=11 // pred_fallthru
        _
      // Predicated region
      $region17: #{tpu_custom_call.1} parent=11 // pred_check
        %p185 = pneg %p107
      $region18: #{tpu_custom_call.1} parent=11 // pred_check_branch
        %187 = sbr.rel (%p185) target = $region20
      $region19: #{tpu_custom_call.1} parent=11 // pred_region
        %p188 = scmp.lt.s32.totalorder %s21, 0
        %s189 = scalar_select %p188, %s21, 0
        %s190 = scalar_lea.vmem %s2, %s189
      $region20: #{tpu_custom_call.1} parent=11 // pred_fallthru
        _
      // Predicated region
      $region21: #{tpu_custom_call.1} parent=11 // pred_check
        %p191 = pneg %p133
      $region22: #{tpu_custom_call.1} parent=11 // pred_check_branch
        %193 = sbr.rel (%p191) target = $region24
      $region23: #{tpu_custom_call.1} parent=11 // pred_region
        %p194 = scmp.lt.s32.totalorder %s21, 0
        %s195 = scalar_select %p194, %s21, 0
        %s196 = scalar_lea.vmem %s3, %s195
      $region24: #{tpu_custom_call.1} parent=11 // pred_fallthru
        _
    $region12: #{tpu_custom_call.1} parent=5 // pred_fallthru
      _
    %p197 = scmp.lt.s32.totalorder %s10, 4
    // Predicated region
    $region25: #{tpu_custom_call.1} parent=5 // pred_check
      %p198 = pneg %p197
    $region26: #{tpu_custom_call.1} parent=5 // pred_check_branch
      %200 = sbr.rel (%p198) target = $region28
    $region27: #{tpu_custom_call.1} parent=5 // pred_region
      // Predicated region
      $region29: #{tpu_custom_call.1} parent=27 // pred_check
        %p201 = pneg %p49
      $region30: #{tpu_custom_call.1} parent=27 // pred_check_branch
        %203 = sbr.rel (%p201) target = $region32
      $region31: #{tpu_custom_call.1} parent=27 // pred_region
        %p204 = scmp.lt.s32.totalorder %s17, 1
        %s205 = scalar_select %p204, %s17, 1
        %s206 = smul.addr %s205, 54
        %s207 = smul.addr %s206, 4
        %s208 = scalar_lea.vmem %s0, %s207
      $region32: #{tpu_custom_call.1} parent=27 // pred_fallthru
        _
    $region28: #{tpu_custom_call.1} parent=5 // pred_fallthru
      _
    %p209 = scmp.le.s32.totalorder 1, %s10
    %p210 = scmp.lt.s32.totalorder %s10, 5
    %p211 = pnand %p209, %p210
    %p212 = pneg %p211
    // Predicated region
    $region33: #{tpu_custom_call.1} parent=5 // pred_check
      _
    $region34: #{tpu_custom_call.1} parent=5 // pred_check_branch
      %214 = sbr.rel (%p211) target = $region36
    $region35: #{tpu_custom_call.1} parent=5 // pred_region
      %s215 = ssub.s32 %s10, 1
      %p216 = scmp.lt.s32.totalorder %s20, 1
      %s217 = scalar_select %p216, %s20, 1
      %s218 = smul.addr %s217, 54
      %s219 = smul.addr %s218, 4
      %s220 = scalar_lea.vmem %s0, %s219
      %p221 = pneg %p55
      %p222 = pneg %p52
      %p223 = scmp.lt.s32.totalorder %s21, 0
      %s224 = scalar_select %p223, %s21, 0
      %s225 = smul.addr %s224, 4
      %s226 = scalar_lea.vmem %s1, %s225
      %p227 = pneg %p81
      %p228 = pneg %p78
      %p229 = scmp.lt.s32.totalorder %s21, 0
      %s230 = scalar_select %p229, %s21, 0
      %s231 = scalar_lea.vmem %s2, %s230
      %p232 = pneg %p107
      %p233 = pneg %p104
      %p234 = scmp.lt.s32.totalorder %s21, 0
      %s235 = scalar_select %p234, %s21, 0
      %s236 = scalar_lea.vmem %s3, %s235
      %p237 = pneg %p133
      %p238 = pneg %p130
      %p239 = pneg %p163
      %p240 = pneg %p160
      %s241 = smul.u32 16, %s22
      %p242 = scmp.lt.s32.totalorder %s20, 1
      %s243 = scalar_select %p242, %s20, 1
      %p244 = scmp.lt.s32.totalorder %s241, 31
      %s245 = scalar_select %p244, %s241, 31
      %p246 = scmp.lt.s32.totalorder %s21, 0
      %s247 = scalar_select %p246, %s21, 0
      %s248 = sadd.s32 %s247, %s245
      %s249 = smul.addr %s243, 32
      %s250 = sadd.s32 %s248, %s249
      %s251 = smul.addr %s250, 4
      %s252 = scalar_lea.vmem %s4, %s251
      %p253 = scmp.lt.s32.totalorder %s20, 1
      %s254 = scalar_select %p253, %s20, 1
      %s255 = smul.addr %s254, 54
      %s256 = smul.addr %s255, 4
      %s257 = scalar_lea.vmem %s0, %s256
      %p258 = scmp.lt.s32.totalorder %s21, 0
      %s259 = scalar_select %p258, %s21, 0
      %s260 = smul.addr %s259, 4
      %s261 = scalar_lea.vmem %s1, %s260
      %p262 = scmp.lt.s32.totalorder %s21, 0
      %s263 = scalar_select %p262, %s21, 0
      %s264 = scalar_lea.vmem %s2, %s263
      %p265 = scmp.lt.s32.totalorder %s21, 0
      %s266 = scalar_select %p265, %s21, 0
      %s267 = scalar_lea.vmem %s3, %s266
      %s268 = smul.u32 16, %s22
      %p269 = scmp.lt.s32.totalorder %s20, 1
      %s270 = scalar_select %p269, %s20, 1
      %p271 = scmp.lt.s32.totalorder %s268, 31
      %s272 = scalar_select %p271, %s268, 31
      %p273 = scmp.lt.s32.totalorder %s21, 0
      %s274 = scalar_select %p273, %s21, 0
      %s275 = sadd.s32 %s274, %s272
      %s276 = smul.addr %s270, 32
      %s277 = sadd.s32 %s275, %s276
      %s278 = smul.addr %s277, 4
      %s279 = scalar_lea.vmem %s4, %s278
      %s280 = smul.u32 16, %s22
      %s282 = smul.u32 %s22, 8
      %s283 = smul.u32 %s282, 3
      %s284 = smul.addr %s283, 4
      %s285 = scalar_lea.vmem %s257, %s284
      %v286 = vld [vmem:[%s285] sm:$0xf]
      %v287 = vld [vmem:[%s285 + $0x4] sm:$0xf]
      %v288 = vld [vmem:[%s285 + $0xc] sm:$0xf]
      %v289 = vld [vmem:[%s285 + $0x10] sm:$0xf]
      %v290 = vld [vmem:[%s285 + $0x18] sm:$0xf]
      %v291 = vld [vmem:[%s285 + $0x1c] sm:$0xf]
      %v292 = vld [vmem:[%s285 + $0x24] sm:$0xf]
      %v293 = vld [vmem:[%s285 + $0x28] sm:$0xf]
      %v294 = vld [vmem:[%s285 + $0x30] sm:$0xf]
      %v295 = vld [vmem:[%s285 + $0x34] sm:$0xf]
      %v296 = vld [vmem:[%s285 + $0x3c] sm:$0xf]
      %v297 = vld [vmem:[%s285 + $0x40] sm:$0xf]
      %v298 = vld [vmem:[%s285 + $0x48] sm:$0xf]
      %v299 = vld [vmem:[%s285 + $0x4c] sm:$0xf]
      %v300 = vld [vmem:[%s285 + $0x54] sm:$0xf]
      %v301 = vld [vmem:[%s285 + $0x58] sm:$0xf]
      %v302 = vld [vmem:[%s261] sm:$0x3]
      %v303 = vld [vmem:[%s285 + $0x8] sm:$0x1]
      %v304 = vld [vmem:[%s285 + $0x14] sm:$0x1]
      %v305 = vld [vmem:[%s285 + $0x20] sm:$0x1]
      %v306 = vld [vmem:[%s285 + $0x2c] sm:$0x1]
      %v307 = vld [vmem:[%s285 + $0x38] sm:$0x1]
      %v308 = vld [vmem:[%s285 + $0x44] sm:$0x1]
      %v309 = vld [vmem:[%s285 + $0x50] sm:$0x1]
      %v310 = vld [vmem:[%s285 + $0x5c] sm:$0x1]
      %vm311 = vsmask.f32 3328
      %vm312 = vsmask.f32 7440
      %vm313 = vmor %vm311, %vm312
      %v315 = vshrl.u32 %v286, 16
      %v317 = vrot.slane %v315, 4
      %v318 = vshll.u32 %v286, 16
      %v320 = vrot.slane %v318, 5
      %v321 = vor.u32 %v317, %v320
      %v322 = vrot.slane %v321, 4
      %v324 = vshll.u32 %v287, 16
      %v326 = vrot.slane %v324, 5
      %v327 = vsel %vm313, %v322, %v326
      %v328 = vshrl.u32 %v287, 16
      %v330 = vrot.slane %v328, 4
      %v331 = vor.u32 %v330, %v326
      %v332 = vrot.slane %v331, 4
      %v334 = vshll.u32 %v303, 16
      %v336 = vrot.slane %v334, 5
      %v337 = vsel %vm313, %v332, %v336
      %v339 = vshrl.u32 %v288, 16
      %v341 = vrot.slane %v339, 4
      %v342 = vshll.u32 %v288, 16
      %v344 = vrot.slane %v342, 5
      %v345 = vor.u32 %v341, %v344
      %v346 = vrot.slane %v345, 4
      %v348 = vshll.u32 %v289, 16
      %v350 = vrot.slane %v348, 5
      %v351 = vsel %vm313, %v346, %v350
      %v352 = vshrl.u32 %v289, 16
      %v354 = vrot.slane %v352, 4
      %v355 = vor.u32 %v354, %v350
      %v356 = vrot.slane %v355, 4
      %v358 = vshll.u32 %v304, 16
      %v360 = vrot.slane %v358, 5
      %v361 = vsel %vm313, %v356, %v360
      %v363 = vshrl.u32 %v290, 16
      %v365 = vrot.slane %v363, 4
      %v366 = vshll.u32 %v290, 16
      %v368 = vrot.slane %v366, 5
      %v369 = vor.u32 %v365, %v368
      %v370 = vrot.slane %v369, 4
      %v372 = vshll.u32 %v291, 16
      %v374 = vrot.slane %v372, 5
      %v375 = vsel %vm313, %v370, %v374
      %v376 = vshrl.u32 %v291, 16
      %v378 = vrot.slane %v376, 4
      %v379 = vor.u32 %v378, %v374
      %v380 = vrot.slane %v379, 4
      %v382 = vshll.u32 %v305, 16
      %v384 = vrot.slane %v382, 5
      %v385 = vsel %vm313, %v380, %v384
      %v387 = vshrl.u32 %v292, 16
      %v389 = vrot.slane %v387, 4
      %v390 = vshll.u32 %v292, 16
      %v392 = vrot.slane %v390, 5
      %v393 = vor.u32 %v389, %v392
      %v394 = vrot.slane %v393, 4
      %v396 = vshll.u32 %v293, 16
      %v398 = vrot.slane %v396, 5
      %v399 = vsel %vm313, %v394, %v398
      %v400 = vshrl.u32 %v293, 16
      %v402 = vrot.slane %v400, 4
      %v403 = vor.u32 %v402, %v398
      %v404 = vrot.slane %v403, 4
      %v406 = vshll.u32 %v306, 16
      %v408 = vrot.slane %v406, 5
      %v409 = vsel %vm313, %v404, %v408
      %v411 = vshrl.u32 %v294, 16
      %v413 = vrot.slane %v411, 4
      %v414 = vshll.u32 %v294, 16
      %v416 = vrot.slane %v414, 5
      %v417 = vor.u32 %v413, %v416
      %v418 = vrot.slane %v417, 4
      %v420 = vshll.u32 %v295, 16
      %v422 = vrot.slane %v420, 5
      %v423 = vsel %vm313, %v418, %v422
      %v424 = vshrl.u32 %v295, 16
      %v426 = vrot.slane %v424, 4
      %v427 = vor.u32 %v426, %v422
      %v428 = vrot.slane %v427, 4
      %v430 = vshll.u32 %v307, 16
      %v432 = vrot.slane %v430, 5
      %v433 = vsel %vm313, %v428, %v432
      %v435 = vshrl.u32 %v296, 16
      %v437 = vrot.slane %v435, 4
      %v438 = vshll.u32 %v296, 16
      %v440 = vrot.slane %v438, 5
      %v441 = vor.u32 %v437, %v440
      %v442 = vrot.slane %v441, 4
      %v444 = vshll.u32 %v297, 16
      %v446 = vrot.slane %v444, 5
      %v447 = vsel %vm313, %v442, %v446
      %v448 = vshrl.u32 %v297, 16
      %v450 = vrot.slane %v448, 4
      %v451 = vor.u32 %v450, %v446
      %v452 = vrot.slane %v451, 4
      %v454 = vshll.u32 %v308, 16
      %v456 = vrot.slane %v454, 5
      %v457 = vsel %vm313, %v452, %v456
      %v459 = vshrl.u32 %v298, 16
      %v461 = vrot.slane %v459, 4
      %v462 = vshll.u32 %v298, 16
      %v464 = vrot.slane %v462, 5
      %v465 = vor.u32 %v461, %v464
      %v466 = vrot.slane %v465, 4
      %v468 = vshll.u32 %v299, 16
      %v470 = vrot.slane %v468, 5
      %v471 = vsel %vm313, %v466, %v470
      %v472 = vshrl.u32 %v299, 16
      %v474 = vrot.slane %v472, 4
      %v475 = vor.u32 %v474, %v470
      %v476 = vrot.slane %v475, 4
      %v478 = vshll.u32 %v309, 16
      %v480 = vrot.slane %v478, 5
      %v481 = vsel %vm313, %v476, %v480
      %v483 = vshrl.u32 %v300, 16
      %v485 = vrot.slane %v483, 4
      %v486 = vshll.u32 %v300, 16
      %v488 = vrot.slane %v486, 5
      %v489 = vor.u32 %v485, %v488
      %v490 = vrot.slane %v489, 4
      %v492 = vshll.u32 %v301, 16
      %v494 = vrot.slane %v492, 5
      %v495 = vsel %vm313, %v490, %v494
      %v496 = vshrl.u32 %v301, 16
      %v498 = vrot.slane %v496, 4
      %v499 = vor.u32 %v498, %v494
      %v500 = vrot.slane %v499, 4
      %v502 = vshll.u32 %v310, 16
      %v504 = vrot.slane %v502, 5
      %v505 = vsel %vm313, %v500, %v504
      %v506 = vld [vmem:[%s261] sm:$0xc]
      %v507 = vunpack.c.l.b16 %v327
      %v508 = vunpack.c.l.b16 %v337
      %v509 = vunpack.c.l.b16 %v351
      %v510 = vunpack.c.l.b16 %v361
      %v511 = vunpack.c.l.b16 %v375
      %v512 = vunpack.c.l.b16 %v385
      %v513 = vunpack.c.l.b16 %v399
      %v514 = vunpack.c.l.b16 %v409
      %v515 = vunpack.c.l.b16 %v423
      %v516 = vunpack.c.l.b16 %v433
      %v517 = vunpack.c.l.b16 %v447
      %v518 = vunpack.c.l.b16 %v457
      %v519 = vunpack.c.l.b16 %v471
      %v520 = vunpack.c.l.b16 %v481
      %v521 = vunpack.c.l.b16 %v495
      %v522 = vunpack.c.l.b16 %v505
      %v523 = vpack.c.b16 %v508, %v507
      %v524 = vpack.c.b16 %v510, %v509
      %v525 = vpack.c.b16 %v512, %v511
      %v526 = vpack.c.b16 %v514, %v513
      %v527 = vpack.c.b16 %v516, %v515
      %v528 = vpack.c.b16 %v518, %v517
      %v529 = vpack.c.b16 %v520, %v519
      %v530 = vpack.c.b16 %v522, %v521
      %v532 = vunpack.c.l.b16 %v506
      %v533 = vpack.c.b16 %v532, %v532
      %v534 = vrot.slane %v533, 2
      %vm535 = vcmask 31744
      %v537 = vsel %vm535, %v523, 0
      %v540 = vsel %vm535, %v524, 0
      %v543 = vsel %vm535, %v525, 0
      %v546 = vsel %vm535, %v526, 0
      %v549 = vsel %vm535, %v527, 0
      %v552 = vsel %vm535, %v528, 0
      %v555 = vsel %vm535, %v529, 0
      %v558 = vsel %vm535, %v530, 0
      %vm560 = vcmask 1041408
      %v562 = vsel %vm560, %v534, 0
      %564 = vmatpush.bf16.msra.mxu0 0
      %565 = vmatpush.bf16.msra.mxu0 0
      %566 = vmatpush.bf16.msra.mxu0 0
      %567 = vmatpush.bf16.msra.mxu0 0
      %568 = vmatpush.bf16.msra.mxu0 0
      %569 = vmatpush.bf16.msra.mxu0 0
      %570 = vmatpush.bf16.msra.mxu0 0
      %571 = vmatpush.bf16.msra.mxu0 %v562
      %572 = vmatmul.bf16.gmra.mxu0 %v537
      %v573 = vpop.f32.mrf.mxu0
      %v574 = vadd.f32 0.0, %v573
      %v575 = vpop.f32.mrf.mxu0
      %v576 = vadd.f32 0.0, %v575
      %577 = vmatmul.bf16.gmra.mxu0 %v540
      %v578 = vpop.f32.mrf.mxu0
      %v579 = vadd.f32 0.0, %v578
      %v580 = vpop.f32.mrf.mxu0
      %v581 = vadd.f32 0.0, %v580
      %582 = vmatmul.bf16.gmra.mxu0 %v543
      %v583 = vpop.f32.mrf.mxu0
      %v584 = vadd.f32 0.0, %v583
      %v585 = vpop.f32.mrf.mxu0
      %v586 = vadd.f32 0.0, %v585
      %587 = vmatmul.bf16.gmra.mxu0 %v546
      %v588 = vpop.f32.mrf.mxu0
      %v589 = vadd.f32 0.0, %v588
      %v590 = vpop.f32.mrf.mxu0
      %v591 = vadd.f32 0.0, %v590
      %592 = vmatmul.bf16.gmra.mxu0 %v549
      %v593 = vpop.f32.mrf.mxu0
      %v594 = vadd.f32 0.0, %v593
      %v595 = vpop.f32.mrf.mxu0
      %v596 = vadd.f32 0.0, %v595
      %597 = vmatmul.bf16.gmra.mxu0 %v552
      %v598 = vpop.f32.mrf.mxu0
      %v599 = vadd.f32 0.0, %v598
      %v600 = vpop.f32.mrf.mxu0
      %v601 = vadd.f32 0.0, %v600
      %602 = vmatmul.bf16.gmra.mxu0 %v555
      %v603 = vpop.f32.mrf.mxu0
      %v604 = vadd.f32 0.0, %v603
      %v605 = vpop.f32.mrf.mxu0
      %v606 = vadd.f32 0.0, %v605
      %607 = vmatmul.bf16.gmra.mxu0 %v558
      %v608 = vpop.f32.mrf.mxu0
      %v609 = vadd.f32 0.0, %v608
      %v610 = vpop.f32.mrf.mxu0
      %v611 = vadd.f32 0.0, %v610
      %612 = vdwg.mxu0
      %v629 = vunpack.c.l.b16 %v286
      %v630 = vunpack.c.l.b16 %v287
      %v631 = vunpack.c.l.b16 %v288
      %v632 = vunpack.c.l.b16 %v289
      %v633 = vunpack.c.l.b16 %v290
      %v634 = vunpack.c.l.b16 %v291
      %v635 = vunpack.c.l.b16 %v292
      %v636 = vunpack.c.l.b16 %v293
      %v637 = vunpack.c.l.b16 %v294
      %v638 = vunpack.c.l.b16 %v295
      %v639 = vunpack.c.l.b16 %v296
      %v640 = vunpack.c.l.b16 %v297
      %v641 = vunpack.c.l.b16 %v298
      %v642 = vunpack.c.l.b16 %v299
      %v643 = vunpack.c.l.b16 %v300
      %v644 = vunpack.c.l.b16 %v301
      %v645 = vpack.c.b16 %v630, %v629
      %v646 = vpack.c.b16 %v632, %v631
      %v647 = vpack.c.b16 %v634, %v633
      %v648 = vpack.c.b16 %v636, %v635
      %v649 = vpack.c.b16 %v638, %v637
      %v650 = vpack.c.b16 %v640, %v639
      %v651 = vpack.c.b16 %v642, %v641
      %v652 = vpack.c.b16 %v644, %v643
      %v654 = vsel %vm535, %v645, 0
      %v657 = vsel %vm535, %v646, 0
      %v660 = vsel %vm535, %v647, 0
      %v663 = vsel %vm535, %v648, 0
      %v666 = vsel %vm535, %v649, 0
      %v669 = vsel %vm535, %v650, 0
      %v672 = vsel %vm535, %v651, 0
      %v675 = vsel %vm535, %v652, 0
      %v678 = vsel %vm560, %v302, 0
      %680 = vmatpush.bf16.msra.mxu0 0
      %681 = vmatpush.bf16.msra.mxu0 0
      %682 = vmatpush.bf16.msra.mxu0 0
      %683 = vmatpush.bf16.msra.mxu0 0
      %684 = vmatpush.bf16.msra.mxu0 0
      %685 = vmatpush.bf16.msra.mxu0 0
      %686 = vmatpush.bf16.msra.mxu0 0
      %687 = vmatpush.bf16.msra.mxu0 %v678
      %688 = vmatmul.bf16.gmra.mxu0 %v654
      %v689 = vpop.f32.mrf.mxu0
      %v690 = vadd.f32 %v574, %v689
      %v691 = vpop.f32.mrf.mxu0
      %v692 = vadd.f32 %v576, %v691
      %693 = vmatmul.bf16.gmra.mxu0 %v657
      %v694 = vpop.f32.mrf.mxu0
      %v695 = vadd.f32 %v579, %v694
      %v696 = vpop.f32.mrf.mxu0
      %v697 = vadd.f32 %v581, %v696
      %698 = vmatmul.bf16.gmra.mxu0 %v660
      %v699 = vpop.f32.mrf.mxu0
      %v700 = vadd.f32 %v584, %v699
      %v701 = vpop.f32.mrf.mxu0
      %v702 = vadd.f32 %v586, %v701
      %703 = vmatmul.bf16.gmra.mxu0 %v663
      %v704 = vpop.f32.mrf.mxu0
      %v705 = vadd.f32 %v589, %v704
      %v706 = vpop.f32.mrf.mxu0
      %v707 = vadd.f32 %v591, %v706
      %708 = vmatmul.bf16.gmra.mxu0 %v666
      %v709 = vpop.f32.mrf.mxu0
      %v710 = vadd.f32 %v594, %v709
      %v711 = vpop.f32.mrf.mxu0
      %v712 = vadd.f32 %v596, %v711
      %713 = vmatmul.bf16.gmra.mxu0 %v669
      %v714 = vpop.f32.mrf.mxu0
      %v715 = vadd.f32 %v599, %v714
      %v716 = vpop.f32.mrf.mxu0
      %v717 = vadd.f32 %v601, %v716
      %718 = vmatmul.bf16.gmra.mxu0 %v672
      %v719 = vpop.f32.mrf.mxu0
      %v720 = vadd.f32 %v604, %v719
      %v721 = vpop.f32.mrf.mxu0
      %v722 = vadd.f32 %v606, %v721
      %723 = vmatmul.bf16.gmra.mxu0 %v675
      %v724 = vpop.f32.mrf.mxu0
      %v725 = vadd.f32 %v609, %v724
      %v726 = vpop.f32.mrf.mxu0
      %v727 = vadd.f32 %v611, %v726
      %728 = vdwg.mxu0
      %v729 = vld [vmem:[%s285] sm:$0xe]
      %v730 = vld [vmem:[%s285 + $0xc] sm:$0xe]
      %v731 = vld [vmem:[%s285 + $0x18] sm:$0xe]
      %v732 = vld [vmem:[%s285 + $0x24] sm:$0xe]
      %v733 = vld [vmem:[%s285 + $0x30] sm:$0xe]
      %v734 = vld [vmem:[%s285 + $0x3c] sm:$0xe]
      %v735 = vld [vmem:[%s285 + $0x48] sm:$0xe]
      %v736 = vld [vmem:[%s285 + $0x54] sm:$0xe]
      %vm753 = vcmask 1042432
      %vm754 = vcmask 1046532
      %vm755 = vmor %vm753, %vm754
      %v756 = vrot.slane %v729, 5
      %v757 = vrot.slane %v756, 4
      %v758 = vrot.slane %v287, 5
      %v759 = vsel %vm755, %v757, %v758
      %v760 = vrot.slane %v758, 4
      %v761 = vrot.slane %v303, 5
      %v762 = vsel %vm755, %v760, %v761
      %v763 = vrot.slane %v730, 5
      %v764 = vrot.slane %v763, 4
      %v765 = vrot.slane %v289, 5
      %v766 = vsel %vm755, %v764, %v765
      %v767 = vrot.slane %v765, 4
      %v768 = vrot.slane %v304, 5
      %v769 = vsel %vm755, %v767, %v768
      %v770 = vrot.slane %v731, 5
      %v771 = vrot.slane %v770, 4
      %v772 = vrot.slane %v291, 5
      %v773 = vsel %vm755, %v771, %v772
      %v774 = vrot.slane %v772, 4
      %v775 = vrot.slane %v305, 5
      %v776 = vsel %vm755, %v774, %v775
      %v777 = vrot.slane %v732, 5
      %v778 = vrot.slane %v777, 4
      %v779 = vrot.slane %v293, 5
      %v780 = vsel %vm755, %v778, %v779
      %v781 = vrot.slane %v779, 4
      %v782 = vrot.slane %v306, 5
      %v783 = vsel %vm755, %v781, %v782
      %v784 = vrot.slane %v733, 5
      %v785 = vrot.slane %v784, 4
      %v786 = vrot.slane %v295, 5
      %v787 = vsel %vm755, %v785, %v786
      %v788 = vrot.slane %v786, 4
      %v789 = vrot.slane %v307, 5
      %v790 = vsel %vm755, %v788, %v789
      %v791 = vrot.slane %v734, 5
      %v792 = vrot.slane %v791, 4
      %v793 = vrot.slane %v297, 5
      %v794 = vsel %vm755, %v792, %v793
      %v795 = vrot.slane %v793, 4
      %v796 = vrot.slane %v308, 5
      %v797 = vsel %vm755, %v795, %v796
      %v798 = vrot.slane %v735, 5
      %v799 = vrot.slane %v798, 4
      %v800 = vrot.slane %v299, 5
      %v801 = vsel %vm755, %v799, %v800
      %v802 = vrot.slane %v800, 4
      %v803 = vrot.slane %v309, 5
      %v804 = vsel %vm755, %v802, %v803
      %v805 = vrot.slane %v736, 5
      %v806 = vrot.slane %v805, 4
      %v807 = vrot.slane %v301, 5
      %v808 = vsel %vm755, %v806, %v807
      %v809 = vrot.slane %v807, 4
      %v810 = vrot.slane %v310, 5
      %v811 = vsel %vm755, %v809, %v810
      %v812 = vld [vmem:[%s261 + $0x4] sm:$0x3]
      %v813 = vunpack.c.l.b16 %v759
      %v814 = vunpack.c.l.b16 %v762
      %v815 = vunpack.c.l.b16 %v766
      %v816 = vunpack.c.l.b16 %v769
      %v817 = vunpack.c.l.b16 %v773
      %v818 = vunpack.c.l.b16 %v776
      %v819 = vunpack.c.l.b16 %v780
      %v820 = vunpack.c.l.b16 %v783
      %v821 = vunpack.c.l.b16 %v787
      %v822 = vunpack.c.l.b16 %v790
      %v823 = vunpack.c.l.b16 %v794
      %v824 = vunpack.c.l.b16 %v797
      %v825 = vunpack.c.l.b16 %v801
      %v826 = vunpack.c.l.b16 %v804
      %v827 = vunpack.c.l.b16 %v808
      %v828 = vunpack.c.l.b16 %v811
      %v829 = vpack.c.b16 %v814, %v813
      %v830 = vpack.c.b16 %v816, %v815
      %v831 = vpack.c.b16 %v818, %v817
      %v832 = vpack.c.b16 %v820, %v819
      %v833 = vpack.c.b16 %v822, %v821
      %v834 = vpack.c.b16 %v824, %v823
      %v835 = vpack.c.b16 %v826, %v825
      %v836 = vpack.c.b16 %v828, %v827
      %v838 = vsel %vm535, %v829, 0
      %v841 = vsel %vm535, %v830, 0
      %v844 = vsel %vm535, %v831, 0
      %v847 = vsel %vm535, %v832, 0
      %v850 = vsel %vm535, %v833, 0
      %v853 = vsel %vm535, %v834, 0
      %v856 = vsel %vm535, %v835, 0
      %v859 = vsel %vm535, %v836, 0
      %v862 = vsel %vm560, %v812, 0
      %864 = vmatpush.bf16.msra.mxu0 0
      %865 = vmatpush.bf16.msra.mxu0 0
      %866 = vmatpush.bf16.msra.mxu0 0
      %867 = vmatpush.bf16.msra.mxu0 0
      %868 = vmatpush.bf16.msra.mxu0 0
      %869 = vmatpush.bf16.msra.mxu0 0
      %870 = vmatpush.bf16.msra.mxu0 0
      %871 = vmatpush.bf16.msra.mxu0 %v862
      %872 = vmatmul.bf16.gmra.mxu0 %v838
      %v873 = vpop.f32.mrf.mxu0
      %v874 = vadd.f32 0.0, %v873
      %v875 = vpop.f32.mrf.mxu0
      %v876 = vadd.f32 0.0, %v875
      %877 = vmatmul.bf16.gmra.mxu0 %v841
      %v878 = vpop.f32.mrf.mxu0
      %v879 = vadd.f32 0.0, %v878
      %v880 = vpop.f32.mrf.mxu0
      %v881 = vadd.f32 0.0, %v880
      %882 = vmatmul.bf16.gmra.mxu0 %v844
      %v883 = vpop.f32.mrf.mxu0
      %v884 = vadd.f32 0.0, %v883
      %v885 = vpop.f32.mrf.mxu0
      %v886 = vadd.f32 0.0, %v885
      %887 = vmatmul.bf16.gmra.mxu0 %v847
      %v888 = vpop.f32.mrf.mxu0
      %v889 = vadd.f32 0.0, %v888
      %v890 = vpop.f32.mrf.mxu0
      %v891 = vadd.f32 0.0, %v890
      %892 = vmatmul.bf16.gmra.mxu0 %v850
      %v893 = vpop.f32.mrf.mxu0
      %v894 = vadd.f32 0.0, %v893
      %v895 = vpop.f32.mrf.mxu0
      %v896 = vadd.f32 0.0, %v895
      %897 = vmatmul.bf16.gmra.mxu0 %v853
      %v898 = vpop.f32.mrf.mxu0
      %v899 = vadd.f32 0.0, %v898
      %v900 = vpop.f32.mrf.mxu0
      %v901 = vadd.f32 0.0, %v900
      %902 = vmatmul.bf16.gmra.mxu0 %v856
      %v903 = vpop.f32.mrf.mxu0
      %v904 = vadd.f32 0.0, %v903
      %v905 = vpop.f32.mrf.mxu0
      %v906 = vadd.f32 0.0, %v905
      %907 = vmatmul.bf16.gmra.mxu0 %v859
      %v908 = vpop.f32.mrf.mxu0
      %v909 = vadd.f32 0.0, %v908
      %v910 = vpop.f32.mrf.mxu0
      %v911 = vadd.f32 0.0, %v910
      %912 = vdwg.mxu0
      %v913 = vadd.f32 %v690, %v874
      %v914 = vadd.f32 %v692, %v876
      %v915 = vadd.f32 %v695, %v879
      %v916 = vadd.f32 %v697, %v881
      %v917 = vadd.f32 %v700, %v884
      %v918 = vadd.f32 %v702, %v886
      %v919 = vadd.f32 %v705, %v889
      %v920 = vadd.f32 %v707, %v891
      %v921 = vadd.f32 %v710, %v894
      %v922 = vadd.f32 %v712, %v896
      %v923 = vadd.f32 %v715, %v899
      %v924 = vadd.f32 %v717, %v901
      %v925 = vadd.f32 %v720, %v904
      %v926 = vadd.f32 %v722, %v906
      %v927 = vadd.f32 %v725, %v909
      %v928 = vadd.f32 %v727, %v911
      %s929 = sadd.s32 %s282, 1
      %s930 = smul.u32 %s929, 3
      %s931 = smul.addr %s930, 4
      %s932 = scalar_lea.vmem %s257, %s931
      %v933 = vld [vmem:[%s932] sm:$0xf]
      %v934 = vld [vmem:[%s932 + $0x4] sm:$0xf]
      %v935 = vld [vmem:[%s932 + $0xc] sm:$0xf]
      %v936 = vld [vmem:[%s932 + $0x10] sm:$0xf]
      %v937 = vld [vmem:[%s932 + $0x18] sm:$0xf]
      %v938 = vld [vmem:[%s932 + $0x1c] sm:$0xf]
      %v939 = vld [vmem:[%s932 + $0x24] sm:$0xf]
      %v940 = vld [vmem:[%s932 + $0x28] sm:$0xf]
      %v941 = vld [vmem:[%s932 + $0x30] sm:$0xf]
      %v942 = vld [vmem:[%s932 + $0x34] sm:$0xf]
      %v943 = vld [vmem:[%s932 + $0x3c] sm:$0xf]
      %v944 = vld [vmem:[%s932 + $0x40] sm:$0xf]
      %v945 = vld [vmem:[%s932 + $0x48] sm:$0xf]
      %v946 = vld [vmem:[%s932 + $0x4c] sm:$0xf]
      %v947 = vld [vmem:[%s932 + $0x54] sm:$0xf]
      %v948 = vld [vmem:[%s932 + $0x58] sm:$0xf]
      %v949 = vld [vmem:[%s261 + $0x4] sm:$0xc]
      %v966 = vunpack.c.l.b16 %v933
      %v967 = vunpack.c.l.b16 %v934
      %v968 = vunpack.c.l.b16 %v935
      %v969 = vunpack.c.l.b16 %v936
      %v970 = vunpack.c.l.b16 %v937
      %v971 = vunpack.c.l.b16 %v938
      %v972 = vunpack.c.l.b16 %v939
      %v973 = vunpack.c.l.b16 %v940
      %v974 = vunpack.c.l.b16 %v941
      %v975 = vunpack.c.l.b16 %v942
      %v976 = vunpack.c.l.b16 %v943
      %v977 = vunpack.c.l.b16 %v944
      %v978 = vunpack.c.l.b16 %v945
      %v979 = vunpack.c.l.b16 %v946
      %v980 = vunpack.c.l.b16 %v947
      %v981 = vunpack.c.l.b16 %v948
      %v982 = vpack.c.b16 %v967, %v966
      %v983 = vpack.c.b16 %v969, %v968
      %v984 = vpack.c.b16 %v971, %v970
      %v985 = vpack.c.b16 %v973, %v972
      %v986 = vpack.c.b16 %v975, %v974
      %v987 = vpack.c.b16 %v977, %v976
      %v988 = vpack.c.b16 %v979, %v978
      %v989 = vpack.c.b16 %v981, %v980
      %v991 = vunpack.c.l.b16 %v949
      %v992 = vpack.c.b16 %v991, %v991
      %v993 = vrot.slane %v992, 2
      %v995 = vsel %vm535, %v982, 0
      %v998 = vsel %vm535, %v983, 0
      %v1001 = vsel %vm535, %v984, 0
      %v1004 = vsel %vm535, %v985, 0
      %v1007 = vsel %vm535, %v986, 0
      %v1010 = vsel %vm535, %v987, 0
      %v1013 = vsel %vm535, %v988, 0
      %v1016 = vsel %vm535, %v989, 0
      %v1019 = vsel %vm560, %v993, 0
      %1021 = vmatpush.bf16.msra.mxu0 0
      %1022 = vmatpush.bf16.msra.mxu0 0
      %1023 = vmatpush.bf16.msra.mxu0 0
      %1024 = vmatpush.bf16.msra.mxu0 0
      %1025 = vmatpush.bf16.msra.mxu0 0
      %1026 = vmatpush.bf16.msra.mxu0 0
      %1027 = vmatpush.bf16.msra.mxu0 0
      %1028 = vmatpush.bf16.msra.mxu0 %v1019
      %1029 = vmatmul.bf16.gmra.mxu0 %v995
      %v1030 = vpop.f32.mrf.mxu0
      %v1031 = vadd.f32 0.0, %v1030
      %v1032 = vpop.f32.mrf.mxu0
      %v1033 = vadd.f32 0.0, %v1032
      %1034 = vmatmul.bf16.gmra.mxu0 %v998
      %v1035 = vpop.f32.mrf.mxu0
      %v1036 = vadd.f32 0.0, %v1035
      %v1037 = vpop.f32.mrf.mxu0
      %v1038 = vadd.f32 0.0, %v1037
      %1039 = vmatmul.bf16.gmra.mxu0 %v1001
      %v1040 = vpop.f32.mrf.mxu0
      %v1041 = vadd.f32 0.0, %v1040
      %v1042 = vpop.f32.mrf.mxu0
      %v1043 = vadd.f32 0.0, %v1042
      %1044 = vmatmul.bf16.gmra.mxu0 %v1004
      %v1045 = vpop.f32.mrf.mxu0
      %v1046 = vadd.f32 0.0, %v1045
      %v1047 = vpop.f32.mrf.mxu0
      %v1048 = vadd.f32 0.0, %v1047
      %1049 = vmatmul.bf16.gmra.mxu0 %v1007
      %v1050 = vpop.f32.mrf.mxu0
      %v1051 = vadd.f32 0.0, %v1050
      %v1052 = vpop.f32.mrf.mxu0
      %v1053 = vadd.f32 0.0, %v1052
      %1054 = vmatmul.bf16.gmra.mxu0 %v1010
      %v1055 = vpop.f32.mrf.mxu0
      %v1056 = vadd.f32 0.0, %v1055
      %v1057 = vpop.f32.mrf.mxu0
      %v1058 = vadd.f32 0.0, %v1057
      %1059 = vmatmul.bf16.gmra.mxu0 %v1013
      %v1060 = vpop.f32.mrf.mxu0
      %v1061 = vadd.f32 0.0, %v1060
      %v1062 = vpop.f32.mrf.mxu0
      %v1063 = vadd.f32 0.0, %v1062
      %1064 = vmatmul.bf16.gmra.mxu0 %v1016
      %v1065 = vpop.f32.mrf.mxu0
      %v1066 = vadd.f32 0.0, %v1065
      %v1067 = vpop.f32.mrf.mxu0
      %v1068 = vadd.f32 0.0, %v1067
      %1069 = vdwg.mxu0
      %v1070 = vadd.f32 %v913, %v1031
      %v1071 = vadd.f32 %v914, %v1033
      %v1072 = vadd.f32 %v915, %v1036
      %v1073 = vadd.f32 %v916, %v1038
      %v1074 = vadd.f32 %v917, %v1041
      %v1075 = vadd.f32 %v918, %v1043
      %v1076 = vadd.f32 %v919, %v1046
      %v1077 = vadd.f32 %v920, %v1048
      %v1078 = vadd.f32 %v921, %v1051
      %v1079 = vadd.f32 %v922, %v1053
      %v1080 = vadd.f32 %v923, %v1056
      %v1081 = vadd.f32 %v924, %v1058
      %v1082 = vadd.f32 %v925, %v1061
      %v1083 = vadd.f32 %v926, %v1063
      %v1084 = vadd.f32 %v927, %v1066
      %v1085 = vadd.f32 %v928, %v1068
      %v1086 = vld [vmem:[%s932] sm:$0xf]
      %v1087 = vld [vmem:[%s932 + $0x4] sm:$0xf]
      %v1088 = vld [vmem:[%s932 + $0x8] sm:$0x1]
      %v1089 = vld [vmem:[%s932 + $0xc] sm:$0xf]
      %v1090 = vld [vmem:[%s932 + $0x10] sm:$0xf]
      %v1091 = vld [vmem:[%s932 + $0x14] sm:$0x1]
      %v1092 = vld [vmem:[%s932 + $0x18] sm:$0xf]
      %v1093 = vld [vmem:[%s932 + $0x1c] sm:$0xf]
      %v1094 = vld [vmem:[%s932 + $0x20] sm:$0x1]
      %v1095 = vld [vmem:[%s932 + $0x24] sm:$0xf]
      %v1096 = vld [vmem:[%s932 + $0x28] sm:$0xf]
      %v1097 = vld [vmem:[%s932 + $0x2c] sm:$0x1]
      %v1098 = vld [vmem:[%s932 + $0x30] sm:$0xf]
      %v1099 = vld [vmem:[%s932 + $0x34] sm:$0xf]
      %v1100 = vld [vmem:[%s932 + $0x38] sm:$0x1]
      %v1101 = vld [vmem:[%s932 + $0x3c] sm:$0xf]
      %v1102 = vld [vmem:[%s932 + $0x40] sm:$0xf]
      %v1103 = vld [vmem:[%s932 + $0x44] sm:$0x1]
      %v1104 = vld [vmem:[%s932 + $0x48] sm:$0xf]
      %v1105 = vld [vmem:[%s932 + $0x4c] sm:$0xf]
      %v1106 = vld [vmem:[%s932 + $0x50] sm:$0x1]
      %v1107 = vld [vmem:[%s932 + $0x54] sm:$0xf]
      %v1108 = vld [vmem:[%s932 + $0x58] sm:$0xf]
      %v1109 = vld [vmem:[%s932 + $0x5c] sm:$0x1]
      %v1111 = vshrl.u32 %v1086, 16
      %v1113 = vrot.slane %v1111, 4
      %v1114 = vshll.u32 %v1086, 16
      %v1116 = vrot.slane %v1114, 5
      %v1117 = vor.u32 %v1113, %v1116
      %v1118 = vrot.slane %v1117, 4
      %v1120 = vshll.u32 %v1087, 16
      %v1122 = vrot.slane %v1120, 5
      %v1123 = vsel %vm313, %v1118, %v1122
      %v1124 = vshrl.u32 %v1087, 16
      %v1126 = vrot.slane %v1124, 4
      %v1127 = vor.u32 %v1126, %v1122
      %v1128 = vrot.slane %v1127, 4
      %v1130 = vshll.u32 %v1088, 16
      %v1132 = vrot.slane %v1130, 5
      %v1133 = vsel %vm313, %v1128, %v1132
      %v1135 = vshrl.u32 %v1089, 16
      %v1137 = vrot.slane %v1135, 4
      %v1138 = vshll.u32 %v1089, 16
      %v1140 = vrot.slane %v1138, 5
      %v1141 = vor.u32 %v1137, %v1140
      %v1142 = vrot.slane %v1141, 4
      %v1144 = vshll.u32 %v1090, 16
      %v1146 = vrot.slane %v1144, 5
      %v1147 = vsel %vm313, %v1142, %v1146
      %v1148 = vshrl.u32 %v1090, 16
      %v1150 = vrot.slane %v1148, 4
      %v1151 = vor.u32 %v1150, %v1146
      %v1152 = vrot.slane %v1151, 4
      %v1154 = vshll.u32 %v1091, 16
      %v1156 = vrot.slane %v1154, 5
      %v1157 = vsel %vm313, %v1152, %v1156
      %v1159 = vshrl.u32 %v1092, 16
      %v1161 = vrot.slane %v1159, 4
      %v1162 = vshll.u32 %v1092, 16
      %v1164 = vrot.slane %v1162, 5
      %v1165 = vor.u32 %v1161, %v1164
      %v1166 = vrot.slane %v1165, 4
      %v1168 = vshll.u32 %v1093, 16
      %v1170 = vrot.slane %v1168, 5
      %v1171 = vsel %vm313, %v1166, %v1170
      %v1172 = vshrl.u32 %v1093, 16
      %v1174 = vrot.slane %v1172, 4
      %v1175 = vor.u32 %v1174, %v1170
      %v1176 = vrot.slane %v1175, 4
      %v1178 = vshll.u32 %v1094, 16
      %v1180 = vrot.slane %v1178, 5
      %v1181 = vsel %vm313, %v1176, %v1180
      %v1183 = vshrl.u32 %v1095, 16
      %v1185 = vrot.slane %v1183, 4
      %v1186 = vshll.u32 %v1095, 16
      %v1188 = vrot.slane %v1186, 5
      %v1189 = vor.u32 %v1185, %v1188
      %v1190 = vrot.slane %v1189, 4
      %v1192 = vshll.u32 %v1096, 16
      %v1194 = vrot.slane %v1192, 5
      %v1195 = vsel %vm313, %v1190, %v1194
      %v1196 = vshrl.u32 %v1096, 16
      %v1198 = vrot.slane %v1196, 4
      %v1199 = vor.u32 %v1198, %v1194
      %v1200 = vrot.slane %v1199, 4
      %v1202 = vshll.u32 %v1097, 16
      %v1204 = vrot.slane %v1202, 5
      %v1205 = vsel %vm313, %v1200, %v1204
      %v1207 = vshrl.u32 %v1098, 16
      %v1209 = vrot.slane %v1207, 4
      %v1210 = vshll.u32 %v1098, 16
      %v1212 = vrot.slane %v1210, 5
      %v1213 = vor.u32 %v1209, %v1212
      %v1214 = vrot.slane %v1213, 4
      %v1216 = vshll.u32 %v1099, 16
      %v1218 = vrot.slane %v1216, 5
      %v1219 = vsel %vm313, %v1214, %v1218
      %v1220 = vshrl.u32 %v1099, 16
      %v1222 = vrot.slane %v1220, 4
      %v1223 = vor.u32 %v1222, %v1218
      %v1224 = vrot.slane %v1223, 4
      %v1226 = vshll.u32 %v1100, 16
      %v1228 = vrot.slane %v1226, 5
      %v1229 = vsel %vm313, %v1224, %v1228
      %v1231 = vshrl.u32 %v1101, 16
      %v1233 = vrot.slane %v1231, 4
      %v1234 = vshll.u32 %v1101, 16
      %v1236 = vrot.slane %v1234, 5
      %v1237 = vor.u32 %v1233, %v1236
      %v1238 = vrot.slane %v1237, 4
      %v1240 = vshll.u32 %v1102, 16
      %v1242 = vrot.slane %v1240, 5
      %v1243 = vsel %vm313, %v1238, %v1242
      %v1244 = vshrl.u32 %v1102, 16
      %v1246 = vrot.slane %v1244, 4
      %v1247 = vor.u32 %v1246, %v1242
      %v1248 = vrot.slane %v1247, 4
      %v1250 = vshll.u32 %v1103, 16
      %v1252 = vrot.slane %v1250, 5
      %v1253 = vsel %vm313, %v1248, %v1252
      %v1255 = vshrl.u32 %v1104, 16
      %v1257 = vrot.slane %v1255, 4
      %v1258 = vshll.u32 %v1104, 16
      %v1260 = vrot.slane %v1258, 5
      %v1261 = vor.u32 %v1257, %v1260
      %v1262 = vrot.slane %v1261, 4
      %v1264 = vshll.u32 %v1105, 16
      %v1266 = vrot.slane %v1264, 5
      %v1267 = vsel %vm313, %v1262, %v1266
      %v1268 = vshrl.u32 %v1105, 16
      %v1270 = vrot.slane %v1268, 4
      %v1271 = vor.u32 %v1270, %v1266
      %v1272 = vrot.slane %v1271, 4
      %v1274 = vshll.u32 %v1106, 16
      %v1276 = vrot.slane %v1274, 5
      %v1277 = vsel %vm313, %v1272, %v1276
      %v1279 = vshrl.u32 %v1107, 16
      %v1281 = vrot.slane %v1279, 4
      %v1282 = vshll.u32 %v1107, 16
      %v1284 = vrot.slane %v1282, 5
      %v1285 = vor.u32 %v1281, %v1284
      %v1286 = vrot.slane %v1285, 4
      %v1288 = vshll.u32 %v1108, 16
      %v1290 = vrot.slane %v1288, 5
      %v1291 = vsel %vm313, %v1286, %v1290
      %v1292 = vshrl.u32 %v1108, 16
      %v1294 = vrot.slane %v1292, 4
      %v1295 = vor.u32 %v1294, %v1290
      %v1296 = vrot.slane %v1295, 4
      %v1298 = vshll.u32 %v1109, 16
      %v1300 = vrot.slane %v1298, 5
      %v1301 = vsel %vm313, %v1296, %v1300
      %v1302 = vld [vmem:[%s261 + $0x8] sm:$0x3]
      %v1303 = vunpack.c.l.b16 %v1123
      %v1304 = vunpack.c.l.b16 %v1133
      %v1305 = vunpack.c.l.b16 %v1147
      %v1306 = vunpack.c.l.b16 %v1157
      %v1307 = vunpack.c.l.b16 %v1171
      %v1308 = vunpack.c.l.b16 %v1181
      %v1309 = vunpack.c.l.b16 %v1195
      %v1310 = vunpack.c.l.b16 %v1205
      %v1311 = vunpack.c.l.b16 %v1219
      %v1312 = vunpack.c.l.b16 %v1229
      %v1313 = vunpack.c.l.b16 %v1243
      %v1314 = vunpack.c.l.b16 %v1253
      %v1315 = vunpack.c.l.b16 %v1267
      %v1316 = vunpack.c.l.b16 %v1277
      %v1317 = vunpack.c.l.b16 %v1291
      %v1318 = vunpack.c.l.b16 %v1301
      %v1319 = vpack.c.b16 %v1304, %v1303
      %v1320 = vpack.c.b16 %v1306, %v1305
      %v1321 = vpack.c.b16 %v1308, %v1307
      %v1322 = vpack.c.b16 %v1310, %v1309
      %v1323 = vpack.c.b16 %v1312, %v1311
      %v1324 = vpack.c.b16 %v1314, %v1313
      %v1325 = vpack.c.b16 %v1316, %v1315
      %v1326 = vpack.c.b16 %v1318, %v1317
      %v1328 = vsel %vm535, %v1319, 0
      %v1331 = vsel %vm535, %v1320, 0
      %v1334 = vsel %vm535, %v1321, 0
      %v1337 = vsel %vm535, %v1322, 0
      %v1340 = vsel %vm535, %v1323, 0
      %v1343 = vsel %vm535, %v1324, 0
      %v1346 = vsel %vm535, %v1325, 0
      %v1349 = vsel %vm535, %v1326, 0
      %v1352 = vsel %vm560, %v1302, 0
      %1354 = vmatpush.bf16.msra.mxu0 0
      %1355 = vmatpush.bf16.msra.mxu0 0
      %1356 = vmatpush.bf16.msra.mxu0 0
      %1357 = vmatpush.bf16.msra.mxu0 0
      %1358 = vmatpush.bf16.msra.mxu0 0
      %1359 = vmatpush.bf16.msra.mxu0 0
      %1360 = vmatpush.bf16.msra.mxu0 0
      %1361 = vmatpush.bf16.msra.mxu0 %v1352
      %1362 = vmatmul.bf16.gmra.mxu0 %v1328
      %v1363 = vpop.f32.mrf.mxu0
      %v1364 = vadd.f32 0.0, %v1363
      %v1365 = vpop.f32.mrf.mxu0
      %v1366 = vadd.f32 0.0, %v1365
      %1367 = vmatmul.bf16.gmra.mxu0 %v1331
      %v1368 = vpop.f32.mrf.mxu0
      %v1369 = vadd.f32 0.0, %v1368
      %v1370 = vpop.f32.mrf.mxu0
      %v1371 = vadd.f32 0.0, %v1370
      %1372 = vmatmul.bf16.gmra.mxu0 %v1334
      %v1373 = vpop.f32.mrf.mxu0
      %v1374 = vadd.f32 0.0, %v1373
      %v1375 = vpop.f32.mrf.mxu0
      %v1376 = vadd.f32 0.0, %v1375
      %1377 = vmatmul.bf16.gmra.mxu0 %v1337
      %v1378 = vpop.f32.mrf.mxu0
      %v1379 = vadd.f32 0.0, %v1378
      %v1380 = vpop.f32.mrf.mxu0
      %v1381 = vadd.f32 0.0, %v1380
      %1382 = vmatmul.bf16.gmra.mxu0 %v1340
      %v1383 = vpop.f32.mrf.mxu0
      %v1384 = vadd.f32 0.0, %v1383
      %v1385 = vpop.f32.mrf.mxu0
      %v1386 = vadd.f32 0.0, %v1385
      %1387 = vmatmul.bf16.gmra.mxu0 %v1343
      %v1388 = vpop.f32.mrf.mxu0
      %v1389 = vadd.f32 0.0, %v1388
      %v1390 = vpop.f32.mrf.mxu0
      %v1391 = vadd.f32 0.0, %v1390
      %1392 = vmatmul.bf16.gmra.mxu0 %v1346
      %v1393 = vpop.f32.mrf.mxu0
      %v1394 = vadd.f32 0.0, %v1393
      %v1395 = vpop.f32.mrf.mxu0
      %v1396 = vadd.f32 0.0, %v1395
      %1397 = vmatmul.bf16.gmra.mxu0 %v1349
      %v1398 = vpop.f32.mrf.mxu0
      %v1399 = vadd.f32 0.0, %v1398
      %v1400 = vpop.f32.mrf.mxu0
      %v1401 = vadd.f32 0.0, %v1400
      %1402 = vdwg.mxu0
      %v1403 = vadd.f32 %v1070, %v1364
      %v1404 = vadd.f32 %v1071, %v1366
      %v1405 = vadd.f32 %v1072, %v1369
      %v1406 = vadd.f32 %v1073, %v1371
      %v1407 = vadd.f32 %v1074, %v1374
      %v1408 = vadd.f32 %v1075, %v1376
      %v1409 = vadd.f32 %v1076, %v1379
      %v1410 = vadd.f32 %v1077, %v1381
      %v1411 = vadd.f32 %v1078, %v1384
      %v1412 = vadd.f32 %v1079, %v1386
      %v1413 = vadd.f32 %v1080, %v1389
      %v1414 = vadd.f32 %v1081, %v1391
      %v1415 = vadd.f32 %v1082, %v1394
      %v1416 = vadd.f32 %v1083, %v1396
      %v1417 = vadd.f32 %v1084, %v1399
      %v1418 = vadd.f32 %v1085, %v1401
      %v1419 = vld [vmem:[%s932] sm:$0xe]
      %v1420 = vld [vmem:[%s932 + $0xc] sm:$0xe]
      %v1421 = vld [vmem:[%s932 + $0x18] sm:$0xe]
      %v1422 = vld [vmem:[%s932 + $0x24] sm:$0xe]
      %v1423 = vld [vmem:[%s932 + $0x30] sm:$0xe]
      %v1424 = vld [vmem:[%s932 + $0x3c] sm:$0xe]
      %v1425 = vld [vmem:[%s932 + $0x48] sm:$0xe]
      %v1426 = vld [vmem:[%s932 + $0x54] sm:$0xe]
      %v1451 = vrot.slane %v1419, 5
      %v1452 = vrot.slane %v1451, 4
      %v1453 = vrot.slane %v1087, 5
      %v1454 = vsel %vm755, %v1452, %v1453
      %v1455 = vrot.slane %v1453, 4
      %v1456 = vrot.slane %v1088, 5
      %v1457 = vsel %vm755, %v1455, %v1456
      %v1458 = vrot.slane %v1420, 5
      %v1459 = vrot.slane %v1458, 4
      %v1460 = vrot.slane %v1090, 5
      %v1461 = vsel %vm755, %v1459, %v1460
      %v1462 = vrot.slane %v1460, 4
      %v1463 = vrot.slane %v1091, 5
      %v1464 = vsel %vm755, %v1462, %v1463
      %v1465 = vrot.slane %v1421, 5
      %v1466 = vrot.slane %v1465, 4
      %v1467 = vrot.slane %v1093, 5
      %v1468 = vsel %vm755, %v1466, %v1467
      %v1469 = vrot.slane %v1467, 4
      %v1470 = vrot.slane %v1094, 5
      %v1471 = vsel %vm755, %v1469, %v1470
      %v1472 = vrot.slane %v1422, 5
      %v1473 = vrot.slane %v1472, 4
      %v1474 = vrot.slane %v1096, 5
      %v1475 = vsel %vm755, %v1473, %v1474
      %v1476 = vrot.slane %v1474, 4
      %v1477 = vrot.slane %v1097, 5
      %v1478 = vsel %vm755, %v1476, %v1477
      %v1479 = vrot.slane %v1423, 5
      %v1480 = vrot.slane %v1479, 4
      %v1481 = vrot.slane %v1099, 5
      %v1482 = vsel %vm755, %v1480, %v1481
      %v1483 = vrot.slane %v1481, 4
      %v1484 = vrot.slane %v1100, 5
      %v1485 = vsel %vm755, %v1483, %v1484
      %v1486 = vrot.slane %v1424, 5
      %v1487 = vrot.slane %v1486, 4
      %v1488 = vrot.slane %v1102, 5
      %v1489 = vsel %vm755, %v1487, %v1488
      %v1490 = vrot.slane %v1488, 4
      %v1491 = vrot.slane %v1103, 5
      %v1492 = vsel %vm755, %v1490, %v1491
      %v1493 = vrot.slane %v1425, 5
      %v1494 = vrot.slane %v1493, 4
      %v1495 = vrot.slane %v1105, 5
      %v1496 = vsel %vm755, %v1494, %v1495
      %v1497 = vrot.slane %v1495, 4
      %v1498 = vrot.slane %v1106, 5
      %v1499 = vsel %vm755, %v1497, %v1498
      %v1500 = vrot.slane %v1426, 5
      %v1501 = vrot.slane %v1500, 4
      %v1502 = vrot.slane %v1108, 5
      %v1503 = vsel %vm755, %v1501, %v1502
      %v1504 = vrot.slane %v1502, 4
      %v1505 = vrot.slane %v1109, 5
      %v1506 = vsel %vm755, %v1504, %v1505
      %v1507 = vld [vmem:[%s261 + $0x8] sm:$0xc]
      %v1508 = vunpack.c.l.b16 %v1454
      %v1509 = vunpack.c.l.b16 %v1457
      %v1510 = vunpack.c.l.b16 %v1461
      %v1511 = vunpack.c.l.b16 %v1464
      %v1512 = vunpack.c.l.b16 %v1468
      %v1513 = vunpack.c.l.b16 %v1471
      %v1514 = vunpack.c.l.b16 %v1475
      %v1515 = vunpack.c.l.b16 %v1478
      %v1516 = vunpack.c.l.b16 %v1482
      %v1517 = vunpack.c.l.b16 %v1485
      %v1518 = vunpack.c.l.b16 %v1489
      %v1519 = vunpack.c.l.b16 %v1492
      %v1520 = vunpack.c.l.b16 %v1496
      %v1521 = vunpack.c.l.b16 %v1499
      %v1522 = vunpack.c.l.b16 %v1503
      %v1523 = vunpack.c.l.b16 %v1506
      %v1524 = vpack.c.b16 %v1509, %v1508
      %v1525 = vpack.c.b16 %v1511, %v1510
      %v1526 = vpack.c.b16 %v1513, %v1512
      %v1527 = vpack.c.b16 %v1515, %v1514
      %v1528 = vpack.c.b16 %v1517, %v1516
      %v1529 = vpack.c.b16 %v1519, %v1518
      %v1530 = vpack.c.b16 %v1521, %v1520
      %v1531 = vpack.c.b16 %v1523, %v1522
      %v1533 = vunpack.c.l.b16 %v1507
      %v1534 = vpack.c.b16 %v1533, %v1533
      %v1535 = vrot.slane %v1534, 2
      %v1537 = vsel %vm535, %v1524, 0
      %v1540 = vsel %vm535, %v1525, 0
      %v1543 = vsel %vm535, %v1526, 0
      %v1546 = vsel %vm535, %v1527, 0
      %v1549 = vsel %vm535, %v1528, 0
      %v1552 = vsel %vm535, %v1529, 0
      %v1555 = vsel %vm535, %v1530, 0
      %v1558 = vsel %vm535, %v1531, 0
      %v1561 = vsel %vm560, %v1535, 0
      %1563 = vmatpush.bf16.msra.mxu0 0
      %1564 = vmatpush.bf16.msra.mxu0 0
      %1565 = vmatpush.bf16.msra.mxu0 0
      %1566 = vmatpush.bf16.msra.mxu0 0
      %1567 = vmatpush.bf16.msra.mxu0 0
      %1568 = vmatpush.bf16.msra.mxu0 0
      %1569 = vmatpush.bf16.msra.mxu0 0
      %1570 = vmatpush.bf16.msra.mxu0 %v1561
      %1571 = vmatmul.bf16.gmra.mxu0 %v1537
      %v1572 = vpop.f32.mrf.mxu0
      %v1573 = vadd.f32 0.0, %v1572
      %v1574 = vpop.f32.mrf.mxu0
      %v1575 = vadd.f32 0.0, %v1574
      %1576 = vmatmul.bf16.gmra.mxu0 %v1540
      %v1577 = vpop.f32.mrf.mxu0
      %v1578 = vadd.f32 0.0, %v1577
      %v1579 = vpop.f32.mrf.mxu0
      %v1580 = vadd.f32 0.0, %v1579
      %1581 = vmatmul.bf16.gmra.mxu0 %v1543
      %v1582 = vpop.f32.mrf.mxu0
      %v1583 = vadd.f32 0.0, %v1582
      %v1584 = vpop.f32.mrf.mxu0
      %v1585 = vadd.f32 0.0, %v1584
      %1586 = vmatmul.bf16.gmra.mxu0 %v1546
      %v1587 = vpop.f32.mrf.mxu0
      %v1588 = vadd.f32 0.0, %v1587
      %v1589 = vpop.f32.mrf.mxu0
      %v1590 = vadd.f32 0.0, %v1589
      %1591 = vmatmul.bf16.gmra.mxu0 %v1549
      %v1592 = vpop.f32.mrf.mxu0
      %v1593 = vadd.f32 0.0, %v1592
      %v1594 = vpop.f32.mrf.mxu0
      %v1595 = vadd.f32 0.0, %v1594
      %1596 = vmatmul.bf16.gmra.mxu0 %v1552
      %v1597 = vpop.f32.mrf.mxu0
      %v1598 = vadd.f32 0.0, %v1597
      %v1599 = vpop.f32.mrf.mxu0
      %v1600 = vadd.f32 0.0, %v1599
      %1601 = vmatmul.bf16.gmra.mxu0 %v1555
      %v1602 = vpop.f32.mrf.mxu0
      %v1603 = vadd.f32 0.0, %v1602
      %v1604 = vpop.f32.mrf.mxu0
      %v1605 = vadd.f32 0.0, %v1604
      %1606 = vmatmul.bf16.gmra.mxu0 %v1558
      %v1607 = vpop.f32.mrf.mxu0
      %v1608 = vadd.f32 0.0, %v1607
      %v1609 = vpop.f32.mrf.mxu0
      %v1610 = vadd.f32 0.0, %v1609
      %1611 = vdwg.mxu0
      %v1612 = vadd.f32 %v1403, %v1573
      %v1613 = vadd.f32 %v1404, %v1575
      %v1614 = vadd.f32 %v1405, %v1578
      %v1615 = vadd.f32 %v1406, %v1580
      %v1616 = vadd.f32 %v1407, %v1583
      %v1617 = vadd.f32 %v1408, %v1585
      %v1618 = vadd.f32 %v1409, %v1588
      %v1619 = vadd.f32 %v1410, %v1590
      %v1620 = vadd.f32 %v1411, %v1593
      %v1621 = vadd.f32 %v1412, %v1595
      %v1622 = vadd.f32 %v1413, %v1598
      %v1623 = vadd.f32 %v1414, %v1600
      %v1624 = vadd.f32 %v1415, %v1603
      %v1625 = vadd.f32 %v1416, %v1605
      %v1626 = vadd.f32 %v1417, %v1608
      %v1627 = vadd.f32 %v1418, %v1610
      %s1628 = sadd.s32 %s282, 2
      %s1629 = smul.u32 %s1628, 3
      %s1630 = smul.addr %s1629, 4
      %s1631 = scalar_lea.vmem %s257, %s1630
      %v1632 = vld [vmem:[%s1631] sm:$0xf]
      %v1633 = vld [vmem:[%s1631 + $0x4] sm:$0xf]
      %v1634 = vld [vmem:[%s1631 + $0xc] sm:$0xf]
      %v1635 = vld [vmem:[%s1631 + $0x10] sm:$0xf]
      %v1636 = vld [vmem:[%s1631 + $0x18] sm:$0xf]
      %v1637 = vld [vmem:[%s1631 + $0x1c] sm:$0xf]
      %v1638 = vld [vmem:[%s1631 + $0x24] sm:$0xf]
      %v1639 = vld [vmem:[%s1631 + $0x28] sm:$0xf]
      %v1640 = vld [vmem:[%s1631 + $0x30] sm:$0xf]
      %v1641 = vld [vmem:[%s1631 + $0x34] sm:$0xf]
      %v1642 = vld [vmem:[%s1631 + $0x3c] sm:$0xf]
      %v1643 = vld [vmem:[%s1631 + $0x40] sm:$0xf]
      %v1644 = vld [vmem:[%s1631 + $0x48] sm:$0xf]
      %v1645 = vld [vmem:[%s1631 + $0x4c] sm:$0xf]
      %v1646 = vld [vmem:[%s1631 + $0x54] sm:$0xf]
      %v1647 = vld [vmem:[%s1631 + $0x58] sm:$0xf]
      %v1648 = vld [vmem:[%s261 + $0xc] sm:$0x3]
      %v1665 = vunpack.c.l.b16 %v1632
      %v1666 = vunpack.c.l.b16 %v1633
      %v1667 = vunpack.c.l.b16 %v1634
      %v1668 = vunpack.c.l.b16 %v1635
      %v1669 = vunpack.c.l.b16 %v1636
      %v1670 = vunpack.c.l.b16 %v1637
      %v1671 = vunpack.c.l.b16 %v1638
      %v1672 = vunpack.c.l.b16 %v1639
      %v1673 = vunpack.c.l.b16 %v1640
      %v1674 = vunpack.c.l.b16 %v1641
      %v1675 = vunpack.c.l.b16 %v1642
      %v1676 = vunpack.c.l.b16 %v1643
      %v1677 = vunpack.c.l.b16 %v1644
      %v1678 = vunpack.c.l.b16 %v1645
      %v1679 = vunpack.c.l.b16 %v1646
      %v1680 = vunpack.c.l.b16 %v1647
      %v1681 = vpack.c.b16 %v1666, %v1665
      %v1682 = vpack.c.b16 %v1668, %v1667
      %v1683 = vpack.c.b16 %v1670, %v1669
      %v1684 = vpack.c.b16 %v1672, %v1671
      %v1685 = vpack.c.b16 %v1674, %v1673
      %v1686 = vpack.c.b16 %v1676, %v1675
      %v1687 = vpack.c.b16 %v1678, %v1677
      %v1688 = vpack.c.b16 %v1680, %v1679
      %v1690 = vsel %vm535, %v1681, 0
      %v1693 = vsel %vm535, %v1682, 0
      %v1696 = vsel %vm535, %v1683, 0
      %v1699 = vsel %vm535, %v1684, 0
      %v1702 = vsel %vm535, %v1685, 0
      %v1705 = vsel %vm535, %v1686, 0
      %v1708 = vsel %vm535, %v1687, 0
      %v1711 = vsel %vm535, %v1688, 0
      %v1714 = vsel %vm560, %v1648, 0
      %1716 = vmatpush.bf16.msra.mxu0 0
      %1717 = vmatpush.bf16.msra.mxu0 0
      %1718 = vmatpush.bf16.msra.mxu0 0
      %1719 = vmatpush.bf16.msra.mxu0 0
      %1720 = vmatpush.bf16.msra.mxu0 0
      %1721 = vmatpush.bf16.msra.mxu0 0
      %1722 = vmatpush.bf16.msra.mxu0 0
      %1723 = vmatpush.bf16.msra.mxu0 %v1714
      %1724 = vmatmul.bf16.gmra.mxu0 %v1690
      %v1725 = vpop.f32.mrf.mxu0
      %v1726 = vadd.f32 0.0, %v1725
      %v1727 = vpop.f32.mrf.mxu0
      %v1728 = vadd.f32 0.0, %v1727
      %1729 = vmatmul.bf16.gmra.mxu0 %v1693
      %v1730 = vpop.f32.mrf.mxu0
      %v1731 = vadd.f32 0.0, %v1730
      %v1732 = vpop.f32.mrf.mxu0
      %v1733 = vadd.f32 0.0, %v1732
      %1734 = vmatmul.bf16.gmra.mxu0 %v1696
      %v1735 = vpop.f32.mrf.mxu0
      %v1736 = vadd.f32 0.0, %v1735
      %v1737 = vpop.f32.mrf.mxu0
      %v1738 = vadd.f32 0.0, %v1737
      %1739 = vmatmul.bf16.gmra.mxu0 %v1699
      %v1740 = vpop.f32.mrf.mxu0
      %v1741 = vadd.f32 0.0, %v1740
      %v1742 = vpop.f32.mrf.mxu0
      %v1743 = vadd.f32 0.0, %v1742
      %1744 = vmatmul.bf16.gmra.mxu0 %v1702
      %v1745 = vpop.f32.mrf.mxu0
      %v1746 = vadd.f32 0.0, %v1745
      %v1747 = vpop.f32.mrf.mxu0
      %v1748 = vadd.f32 0.0, %v1747
      %1749 = vmatmul.bf16.gmra.mxu0 %v1705
      %v1750 = vpop.f32.mrf.mxu0
      %v1751 = vadd.f32 0.0, %v1750
      %v1752 = vpop.f32.mrf.mxu0
      %v1753 = vadd.f32 0.0, %v1752
      %1754 = vmatmul.bf16.gmra.mxu0 %v1708
      %v1755 = vpop.f32.mrf.mxu0
      %v1756 = vadd.f32 0.0, %v1755
      %v1757 = vpop.f32.mrf.mxu0
      %v1758 = vadd.f32 0.0, %v1757
      %1759 = vmatmul.bf16.gmra.mxu0 %v1711
      %v1760 = vpop.f32.mrf.mxu0
      %v1761 = vadd.f32 0.0, %v1760
      %v1762 = vpop.f32.mrf.mxu0
      %v1763 = vadd.f32 0.0, %v1762
      %1764 = vdwg.mxu0
      %v1765 = vadd.f32 %v1612, %v1726
      %v1766 = vadd.f32 %v1613, %v1728
      %v1767 = vadd.f32 %v1614, %v1731
      %v1768 = vadd.f32 %v1615, %v1733
      %v1769 = vadd.f32 %v1616, %v1736
      %v1770 = vadd.f32 %v1617, %v1738
      %v1771 = vadd.f32 %v1618, %v1741
      %v1772 = vadd.f32 %v1619, %v1743
      %v1773 = vadd.f32 %v1620, %v1746
      %v1774 = vadd.f32 %v1621, %v1748
      %v1775 = vadd.f32 %v1622, %v1751
      %v1776 = vadd.f32 %v1623, %v1753
      %v1777 = vadd.f32 %v1624, %v1756
      %v1778 = vadd.f32 %v1625, %v1758
      %v1779 = vadd.f32 %v1626, %v1761
      %v1780 = vadd.f32 %v1627, %v1763
      %v1781 = vld [vmem:[%s1631] sm:$0xf]
      %v1782 = vld [vmem:[%s1631 + $0x4] sm:$0xf]
      %v1783 = vld [vmem:[%s1631 + $0x8] sm:$0x1]
      %v1784 = vld [vmem:[%s1631 + $0xc] sm:$0xf]
      %v1785 = vld [vmem:[%s1631 + $0x10] sm:$0xf]
      %v1786 = vld [vmem:[%s1631 + $0x14] sm:$0x1]
      %v1787 = vld [vmem:[%s1631 + $0x18] sm:$0xf]
      %v1788 = vld [vmem:[%s1631 + $0x1c] sm:$0xf]
      %v1789 = vld [vmem:[%s1631 + $0x20] sm:$0x1]
      %v1790 = vld [vmem:[%s1631 + $0x24] sm:$0xf]
      %v1791 = vld [vmem:[%s1631 + $0x28] sm:$0xf]
      %v1792 = vld [vmem:[%s1631 + $0x2c] sm:$0x1]
      %v1793 = vld [vmem:[%s1631 + $0x30] sm:$0xf]
      %v1794 = vld [vmem:[%s1631 + $0x34] sm:$0xf]
      %v1795 = vld [vmem:[%s1631 + $0x38] sm:$0x1]
      %v1796 = vld [vmem:[%s1631 + $0x3c] sm:$0xf]
      %v1797 = vld [vmem:[%s1631 + $0x40] sm:$0xf]
      %v1798 = vld [vmem:[%s1631 + $0x44] sm:$0x1]
      %v1799 = vld [vmem:[%s1631 + $0x48] sm:$0xf]
      %v1800 = vld [vmem:[%s1631 + $0x4c] sm:$0xf]
      %v1801 = vld [vmem:[%s1631 + $0x50] sm:$0x1]
      %v1802 = vld [vmem:[%s1631 + $0x54] sm:$0xf]
      %v1803 = vld [vmem:[%s1631 + $0x58] sm:$0xf]
      %v1804 = vld [vmem:[%s1631 + $0x5c] sm:$0x1]
      %v1806 = vshrl.u32 %v1781, 16
      %v1808 = vrot.slane %v1806, 4
      %v1809 = vshll.u32 %v1781, 16
      %v1811 = vrot.slane %v1809, 5
      %v1812 = vor.u32 %v1808, %v1811
      %v1813 = vrot.slane %v1812, 4
      %v1815 = vshll.u32 %v1782, 16
      %v1817 = vrot.slane %v1815, 5
      %v1818 = vsel %vm313, %v1813, %v1817
      %v1819 = vshrl.u32 %v1782, 16
      %v1821 = vrot.slane %v1819, 4
      %v1822 = vor.u32 %v1821, %v1817
      %v1823 = vrot.slane %v1822, 4
      %v1825 = vshll.u32 %v1783, 16
      %v1827 = vrot.slane %v1825, 5
      %v1828 = vsel %vm313, %v1823, %v1827
      %v1830 = vshrl.u32 %v1784, 16
      %v1832 = vrot.slane %v1830, 4
      %v1833 = vshll.u32 %v1784, 16
      %v1835 = vrot.slane %v1833, 5
      %v1836 = vor.u32 %v1832, %v1835
      %v1837 = vrot.slane %v1836, 4
      %v1839 = vshll.u32 %v1785, 16
      %v1841 = vrot.slane %v1839, 5
      %v1842 = vsel %vm313, %v1837, %v1841
      %v1843 = vshrl.u32 %v1785, 16
      %v1845 = vrot.slane %v1843, 4
      %v1846 = vor.u32 %v1845, %v1841
      %v1847 = vrot.slane %v1846, 4
      %v1849 = vshll.u32 %v1786, 16
      %v1851 = vrot.slane %v1849, 5
      %v1852 = vsel %vm313, %v1847, %v1851
      %v1854 = vshrl.u32 %v1787, 16
      %v1856 = vrot.slane %v1854, 4
      %v1857 = vshll.u32 %v1787, 16
      %v1859 = vrot.slane %v1857, 5
      %v1860 = vor.u32 %v1856, %v1859
      %v1861 = vrot.slane %v1860, 4
      %v1863 = vshll.u32 %v1788, 16
      %v1865 = vrot.slane %v1863, 5
      %v1866 = vsel %vm313, %v1861, %v1865
      %v1867 = vshrl.u32 %v1788, 16
      %v1869 = vrot.slane %v1867, 4
      %v1870 = vor.u32 %v1869, %v1865
      %v1871 = vrot.slane %v1870, 4
      %v1873 = vshll.u32 %v1789, 16
      %v1875 = vrot.slane %v1873, 5
      %v1876 = vsel %vm313, %v1871, %v1875
      %v1878 = vshrl.u32 %v1790, 16
      %v1880 = vrot.slane %v1878, 4
      %v1881 = vshll.u32 %v1790, 16
      %v1883 = vrot.slane %v1881, 5
      %v1884 = vor.u32 %v1880, %v1883
      %v1885 = vrot.slane %v1884, 4
      %v1887 = vshll.u32 %v1791, 16
      %v1889 = vrot.slane %v1887, 5
      %v1890 = vsel %vm313, %v1885, %v1889
      %v1891 = vshrl.u32 %v1791, 16
      %v1893 = vrot.slane %v1891, 4
      %v1894 = vor.u32 %v1893, %v1889
      %v1895 = vrot.slane %v1894, 4
      %v1897 = vshll.u32 %v1792, 16
      %v1899 = vrot.slane %v1897, 5
      %v1900 = vsel %vm313, %v1895, %v1899
      %v1902 = vshrl.u32 %v1793, 16
      %v1904 = vrot.slane %v1902, 4
      %v1905 = vshll.u32 %v1793, 16
      %v1907 = vrot.slane %v1905, 5
      %v1908 = vor.u32 %v1904, %v1907
      %v1909 = vrot.slane %v1908, 4
      %v1911 = vshll.u32 %v1794, 16
      %v1913 = vrot.slane %v1911, 5
      %v1914 = vsel %vm313, %v1909, %v1913
      %v1915 = vshrl.u32 %v1794, 16
      %v1917 = vrot.slane %v1915, 4
      %v1918 = vor.u32 %v1917, %v1913
      %v1919 = vrot.slane %v1918, 4
      %v1921 = vshll.u32 %v1795, 16
      %v1923 = vrot.slane %v1921, 5
      %v1924 = vsel %vm313, %v1919, %v1923
      %v1926 = vshrl.u32 %v1796, 16
      %v1928 = vrot.slane %v1926, 4
      %v1929 = vshll.u32 %v1796, 16
      %v1931 = vrot.slane %v1929, 5
      %v1932 = vor.u32 %v1928, %v1931
      %v1933 = vrot.slane %v1932, 4
      %v1935 = vshll.u32 %v1797, 16
      %v1937 = vrot.slane %v1935, 5
      %v1938 = vsel %vm313, %v1933, %v1937
      %v1939 = vshrl.u32 %v1797, 16
      %v1941 = vrot.slane %v1939, 4
      %v1942 = vor.u32 %v1941, %v1937
      %v1943 = vrot.slane %v1942, 4
      %v1945 = vshll.u32 %v1798, 16
      %v1947 = vrot.slane %v1945, 5
      %v1948 = vsel %vm313, %v1943, %v1947
      %v1950 = vshrl.u32 %v1799, 16
      %v1952 = vrot.slane %v1950, 4
      %v1953 = vshll.u32 %v1799, 16
      %v1955 = vrot.slane %v1953, 5
      %v1956 = vor.u32 %v1952, %v1955
      %v1957 = vrot.slane %v1956, 4
      %v1959 = vshll.u32 %v1800, 16
      %v1961 = vrot.slane %v1959, 5
      %v1962 = vsel %vm313, %v1957, %v1961
      %v1963 = vshrl.u32 %v1800, 16
      %v1965 = vrot.slane %v1963, 4
      %v1966 = vor.u32 %v1965, %v1961
      %v1967 = vrot.slane %v1966, 4
      %v1969 = vshll.u32 %v1801, 16
      %v1971 = vrot.slane %v1969, 5
      %v1972 = vsel %vm313, %v1967, %v1971
      %v1974 = vshrl.u32 %v1802, 16
      %v1976 = vrot.slane %v1974, 4
      %v1977 = vshll.u32 %v1802, 16
      %v1979 = vrot.slane %v1977, 5
      %v1980 = vor.u32 %v1976, %v1979
      %v1981 = vrot.slane %v1980, 4
      %v1983 = vshll.u32 %v1803, 16
      %v1985 = vrot.slane %v1983, 5
      %v1986 = vsel %vm313, %v1981, %v1985
      %v1987 = vshrl.u32 %v1803, 16
      %v1989 = vrot.slane %v1987, 4
      %v1990 = vor.u32 %v1989, %v1985
      %v1991 = vrot.slane %v1990, 4
      %v1993 = vshll.u32 %v1804, 16
      %v1995 = vrot.slane %v1993, 5
      %v1996 = vsel %vm313, %v1991, %v1995
      %v1997 = vld [vmem:[%s261 + $0xc] sm:$0xc]
      %v1998 = vunpack.c.l.b16 %v1818
      %v1999 = vunpack.c.l.b16 %v1828
      %v2000 = vunpack.c.l.b16 %v1842
      %v2001 = vunpack.c.l.b16 %v1852
      %v2002 = vunpack.c.l.b16 %v1866
      %v2003 = vunpack.c.l.b16 %v1876
      %v2004 = vunpack.c.l.b16 %v1890
      %v2005 = vunpack.c.l.b16 %v1900
      %v2006 = vunpack.c.l.b16 %v1914
      %v2007 = vunpack.c.l.b16 %v1924
      %v2008 = vunpack.c.l.b16 %v1938
      %v2009 = vunpack.c.l.b16 %v1948
      %v2010 = vunpack.c.l.b16 %v1962
      %v2011 = vunpack.c.l.b16 %v1972
      %v2012 = vunpack.c.l.b16 %v1986
      %v2013 = vunpack.c.l.b16 %v1996
      %v2014 = vpack.c.b16 %v1999, %v1998
      %v2015 = vpack.c.b16 %v2001, %v2000
      %v2016 = vpack.c.b16 %v2003, %v2002
      %v2017 = vpack.c.b16 %v2005, %v2004
      %v2018 = vpack.c.b16 %v2007, %v2006
      %v2019 = vpack.c.b16 %v2009, %v2008
      %v2020 = vpack.c.b16 %v2011, %v2010
      %v2021 = vpack.c.b16 %v2013, %v2012
      %v2023 = vunpack.c.l.b16 %v1997
      %v2024 = vpack.c.b16 %v2023, %v2023
      %v2025 = vrot.slane %v2024, 2
      %v2027 = vsel %vm535, %v2014, 0
      %v2030 = vsel %vm535, %v2015, 0
      %v2033 = vsel %vm535, %v2016, 0
      %v2036 = vsel %vm535, %v2017, 0
      %v2039 = vsel %vm535, %v2018, 0
      %v2042 = vsel %vm535, %v2019, 0
      %v2045 = vsel %vm535, %v2020, 0
      %v2048 = vsel %vm535, %v2021, 0
      %v2051 = vsel %vm560, %v2025, 0
      %2053 = vmatpush.bf16.msra.mxu0 0
      %2054 = vmatpush.bf16.msra.mxu0 0
      %2055 = vmatpush.bf16.msra.mxu0 0
      %2056 = vmatpush.bf16.msra.mxu0 0
      %2057 = vmatpush.bf16.msra.mxu0 0
      %2058 = vmatpush.bf16.msra.mxu0 0
      %2059 = vmatpush.bf16.msra.mxu0 0
      %2060 = vmatpush.bf16.msra.mxu0 %v2051
      %2061 = vmatmul.bf16.gmra.mxu0 %v2027
      %v2062 = vpop.f32.mrf.mxu0
      %v2063 = vadd.f32 0.0, %v2062
      %v2064 = vpop.f32.mrf.mxu0
      %v2065 = vadd.f32 0.0, %v2064
      %2066 = vmatmul.bf16.gmra.mxu0 %v2030
      %v2067 = vpop.f32.mrf.mxu0
      %v2068 = vadd.f32 0.0, %v2067
      %v2069 = vpop.f32.mrf.mxu0
      %v2070 = vadd.f32 0.0, %v2069
      %2071 = vmatmul.bf16.gmra.mxu0 %v2033
      %v2072 = vpop.f32.mrf.mxu0
      %v2073 = vadd.f32 0.0, %v2072
      %v2074 = vpop.f32.mrf.mxu0
      %v2075 = vadd.f32 0.0, %v2074
      %2076 = vmatmul.bf16.gmra.mxu0 %v2036
      %v2077 = vpop.f32.mrf.mxu0
      %v2078 = vadd.f32 0.0, %v2077
      %v2079 = vpop.f32.mrf.mxu0
      %v2080 = vadd.f32 0.0, %v2079
      %2081 = vmatmul.bf16.gmra.mxu0 %v2039
      %v2082 = vpop.f32.mrf.mxu0
      %v2083 = vadd.f32 0.0, %v2082
      %v2084 = vpop.f32.mrf.mxu0
      %v2085 = vadd.f32 0.0, %v2084
      %2086 = vmatmul.bf16.gmra.mxu0 %v2042
      %v2087 = vpop.f32.mrf.mxu0
      %v2088 = vadd.f32 0.0, %v2087
      %v2089 = vpop.f32.mrf.mxu0
      %v2090 = vadd.f32 0.0, %v2089
      %2091 = vmatmul.bf16.gmra.mxu0 %v2045
      %v2092 = vpop.f32.mrf.mxu0
      %v2093 = vadd.f32 0.0, %v2092
      %v2094 = vpop.f32.mrf.mxu0
      %v2095 = vadd.f32 0.0, %v2094
      %2096 = vmatmul.bf16.gmra.mxu0 %v2048
      %v2097 = vpop.f32.mrf.mxu0
      %v2098 = vadd.f32 0.0, %v2097
      %v2099 = vpop.f32.mrf.mxu0
      %v2100 = vadd.f32 0.0, %v2099
      %2101 = vdwg.mxu0
      %v2102 = vadd.f32 %v1765, %v2063
      %v2103 = vadd.f32 %v1766, %v2065
      %v2104 = vadd.f32 %v1767, %v2068
      %v2105 = vadd.f32 %v1768, %v2070
      %v2106 = vadd.f32 %v1769, %v2073
      %v2107 = vadd.f32 %v1770, %v2075
      %v2108 = vadd.f32 %v1771, %v2078
      %v2109 = vadd.f32 %v1772, %v2080
      %v2110 = vadd.f32 %v1773, %v2083
      %v2111 = vadd.f32 %v1774, %v2085
      %v2112 = vadd.f32 %v1775, %v2088
      %v2113 = vadd.f32 %v1776, %v2090
      %v2114 = vadd.f32 %v1777, %v2093
      %v2115 = vadd.f32 %v1778, %v2095
      %v2116 = vadd.f32 %v1779, %v2098
      %v2117 = vadd.f32 %v1780, %v2100
      %v2118 = vld [vmem:[%s1631] sm:$0xe]
      %v2119 = vld [vmem:[%s1631 + $0xc] sm:$0xe]
      %v2120 = vld [vmem:[%s1631 + $0x18] sm:$0xe]
      %v2121 = vld [vmem:[%s1631 + $0x24] sm:$0xe]
      %v2122 = vld [vmem:[%s1631 + $0x30] sm:$0xe]
      %v2123 = vld [vmem:[%s1631 + $0x3c] sm:$0xe]
      %v2124 = vld [vmem:[%s1631 + $0x48] sm:$0xe]
      %v2125 = vld [vmem:[%s1631 + $0x54] sm:$0xe]
      %v2150 = vrot.slane %v2118, 5
      %v2151 = vrot.slane %v2150, 4
      %v2152 = vrot.slane %v1782, 5
      %v2153 = vsel %vm755, %v2151, %v2152
      %v2154 = vrot.slane %v2152, 4
      %v2155 = vrot.slane %v1783, 5
      %v2156 = vsel %vm755, %v2154, %v2155
      %v2157 = vrot.slane %v2119, 5
      %v2158 = vrot.slane %v2157, 4
      %v2159 = vrot.slane %v1785, 5
      %v2160 = vsel %vm755, %v2158, %v2159
      %v2161 = vrot.slane %v2159, 4
      %v2162 = vrot.slane %v1786, 5
      %v2163 = vsel %vm755, %v2161, %v2162
      %v2164 = vrot.slane %v2120, 5
      %v2165 = vrot.slane %v2164, 4
      %v2166 = vrot.slane %v1788, 5
      %v2167 = vsel %vm755, %v2165, %v2166
      %v2168 = vrot.slane %v2166, 4
      %v2169 = vrot.slane %v1789, 5
      %v2170 = vsel %vm755, %v2168, %v2169
      %v2171 = vrot.slane %v2121, 5
      %v2172 = vrot.slane %v2171, 4
      %v2173 = vrot.slane %v1791, 5
      %v2174 = vsel %vm755, %v2172, %v2173
      %v2175 = vrot.slane %v2173, 4
      %v2176 = vrot.slane %v1792, 5
      %v2177 = vsel %vm755, %v2175, %v2176
      %v2178 = vrot.slane %v2122, 5
      %v2179 = vrot.slane %v2178, 4
      %v2180 = vrot.slane %v1794, 5
      %v2181 = vsel %vm755, %v2179, %v2180
      %v2182 = vrot.slane %v2180, 4
      %v2183 = vrot.slane %v1795, 5
      %v2184 = vsel %vm755, %v2182, %v2183
      %v2185 = vrot.slane %v2123, 5
      %v2186 = vrot.slane %v2185, 4
      %v2187 = vrot.slane %v1797, 5
      %v2188 = vsel %vm755, %v2186, %v2187
      %v2189 = vrot.slane %v2187, 4
      %v2190 = vrot.slane %v1798, 5
      %v2191 = vsel %vm755, %v2189, %v2190
      %v2192 = vrot.slane %v2124, 5
      %v2193 = vrot.slane %v2192, 4
      %v2194 = vrot.slane %v1800, 5
      %v2195 = vsel %vm755, %v2193, %v2194
      %v2196 = vrot.slane %v2194, 4
      %v2197 = vrot.slane %v1801, 5
      %v2198 = vsel %vm755, %v2196, %v2197
      %v2199 = vrot.slane %v2125, 5
      %v2200 = vrot.slane %v2199, 4
      %v2201 = vrot.slane %v1803, 5
      %v2202 = vsel %vm755, %v2200, %v2201
      %v2203 = vrot.slane %v2201, 4
      %v2204 = vrot.slane %v1804, 5
      %v2205 = vsel %vm755, %v2203, %v2204
      %v2206 = vld [vmem:[%s261 + $0x10] sm:$0x3]
      %v2207 = vunpack.c.l.b16 %v2153
      %v2208 = vunpack.c.l.b16 %v2156
      %v2209 = vunpack.c.l.b16 %v2160
      %v2210 = vunpack.c.l.b16 %v2163
      %v2211 = vunpack.c.l.b16 %v2167
      %v2212 = vunpack.c.l.b16 %v2170
      %v2213 = vunpack.c.l.b16 %v2174
      %v2214 = vunpack.c.l.b16 %v2177
      %v2215 = vunpack.c.l.b16 %v2181
      %v2216 = vunpack.c.l.b16 %v2184
      %v2217 = vunpack.c.l.b16 %v2188
      %v2218 = vunpack.c.l.b16 %v2191
      %v2219 = vunpack.c.l.b16 %v2195
      %v2220 = vunpack.c.l.b16 %v2198
      %v2221 = vunpack.c.l.b16 %v2202
      %v2222 = vunpack.c.l.b16 %v2205
      %v2223 = vpack.c.b16 %v2208, %v2207
      %v2224 = vpack.c.b16 %v2210, %v2209
      %v2225 = vpack.c.b16 %v2212, %v2211
      %v2226 = vpack.c.b16 %v2214, %v2213
      %v2227 = vpack.c.b16 %v2216, %v2215
      %v2228 = vpack.c.b16 %v2218, %v2217
      %v2229 = vpack.c.b16 %v2220, %v2219
      %v2230 = vpack.c.b16 %v2222, %v2221
      %v2232 = vsel %vm535, %v2223, 0
      %v2235 = vsel %vm535, %v2224, 0
      %v2238 = vsel %vm535, %v2225, 0
      %v2241 = vsel %vm535, %v2226, 0
      %v2244 = vsel %vm535, %v2227, 0
      %v2247 = vsel %vm535, %v2228, 0
      %v2250 = vsel %vm535, %v2229, 0
      %v2253 = vsel %vm535, %v2230, 0
      %v2256 = vsel %vm560, %v2206, 0
      %2258 = vmatpush.bf16.msra.mxu0 0
      %2259 = vmatpush.bf16.msra.mxu0 0
      %2260 = vmatpush.bf16.msra.mxu0 0
      %2261 = vmatpush.bf16.msra.mxu0 0
      %2262 = vmatpush.bf16.msra.mxu0 0
      %2263 = vmatpush.bf16.msra.mxu0 0
      %2264 = vmatpush.bf16.msra.mxu0 0
      %2265 = vmatpush.bf16.msra.mxu0 %v2256
      %2266 = vmatmul.bf16.gmra.mxu0 %v2232
      %v2267 = vpop.f32.mrf.mxu0
      %v2268 = vadd.f32 0.0, %v2267
      %v2269 = vpop.f32.mrf.mxu0
      %v2270 = vadd.f32 0.0, %v2269
      %2271 = vmatmul.bf16.gmra.mxu0 %v2235
      %v2272 = vpop.f32.mrf.mxu0
      %v2273 = vadd.f32 0.0, %v2272
      %v2274 = vpop.f32.mrf.mxu0
      %v2275 = vadd.f32 0.0, %v2274
      %2276 = vmatmul.bf16.gmra.mxu0 %v2238
      %v2277 = vpop.f32.mrf.mxu0
      %v2278 = vadd.f32 0.0, %v2277
      %v2279 = vpop.f32.mrf.mxu0
      %v2280 = vadd.f32 0.0, %v2279
      %2281 = vmatmul.bf16.gmra.mxu0 %v2241
      %v2282 = vpop.f32.mrf.mxu0
      %v2283 = vadd.f32 0.0, %v2282
      %v2284 = vpop.f32.mrf.mxu0
      %v2285 = vadd.f32 0.0, %v2284
      %2286 = vmatmul.bf16.gmra.mxu0 %v2244
      %v2287 = vpop.f32.mrf.mxu0
      %v2288 = vadd.f32 0.0, %v2287
      %v2289 = vpop.f32.mrf.mxu0
      %v2290 = vadd.f32 0.0, %v2289
      %2291 = vmatmul.bf16.gmra.mxu0 %v2247
      %v2292 = vpop.f32.mrf.mxu0
      %v2293 = vadd.f32 0.0, %v2292
      %v2294 = vpop.f32.mrf.mxu0
      %v2295 = vadd.f32 0.0, %v2294
      %2296 = vmatmul.bf16.gmra.mxu0 %v2250
      %v2297 = vpop.f32.mrf.mxu0
      %v2298 = vadd.f32 0.0, %v2297
      %v2299 = vpop.f32.mrf.mxu0
      %v2300 = vadd.f32 0.0, %v2299
      %2301 = vmatmul.bf16.gmra.mxu0 %v2253
      %v2302 = vpop.f32.mrf.mxu0
      %v2303 = vadd.f32 0.0, %v2302
      %v2304 = vpop.f32.mrf.mxu0
      %v2305 = vadd.f32 0.0, %v2304
      %2306 = vdwg.mxu0
      %v2307 = vadd.f32 %v2102, %v2268
      %v2308 = vadd.f32 %v2103, %v2270
      %v2309 = vadd.f32 %v2104, %v2273
      %v2310 = vadd.f32 %v2105, %v2275
      %v2311 = vadd.f32 %v2106, %v2278
      %v2312 = vadd.f32 %v2107, %v2280
      %v2313 = vadd.f32 %v2108, %v2283
      %v2314 = vadd.f32 %v2109, %v2285
      %v2315 = vadd.f32 %v2110, %v2288
      %v2316 = vadd.f32 %v2111, %v2290
      %v2317 = vadd.f32 %v2112, %v2293
      %v2318 = vadd.f32 %v2113, %v2295
      %v2319 = vadd.f32 %v2114, %v2298
      %v2320 = vadd.f32 %v2115, %v2300
      %v2321 = vadd.f32 %v2116, %v2303
      %v2322 = vadd.f32 %v2117, %v2305
      %v2323 = vld [vmem:[%s264] sm:$0x1]
      %v2325 = vperm.slane %v2323, 0
      %v2327 = vmul.f32 %v2307, %v2325
      %v2328 = vmul.f32 %v2308, %v2325
      %v2329 = vmul.f32 %v2309, %v2325
      %v2330 = vmul.f32 %v2310, %v2325
      %v2331 = vmul.f32 %v2311, %v2325
      %v2332 = vmul.f32 %v2312, %v2325
      %v2333 = vmul.f32 %v2313, %v2325
      %v2334 = vmul.f32 %v2314, %v2325
      %v2335 = vmul.f32 %v2315, %v2325
      %v2336 = vmul.f32 %v2316, %v2325
      %v2337 = vmul.f32 %v2317, %v2325
      %v2338 = vmul.f32 %v2318, %v2325
      %v2339 = vmul.f32 %v2319, %v2325
      %v2340 = vmul.f32 %v2320, %v2325
      %v2341 = vmul.f32 %v2321, %v2325
      %v2342 = vmul.f32 %v2322, %v2325
      %v2343 = vld [vmem:[%s267] sm:$0x1]
      %v2345 = vperm.slane %v2343, 0
      %v2347 = vadd.f32 %v2327, %v2345
      %v2348 = vadd.f32 %v2328, %v2345
      %v2349 = vadd.f32 %v2329, %v2345
      %v2350 = vadd.f32 %v2330, %v2345
      %v2351 = vadd.f32 %v2331, %v2345
      %v2352 = vadd.f32 %v2332, %v2345
      %v2353 = vadd.f32 %v2333, %v2345
      %v2354 = vadd.f32 %v2334, %v2345
      %v2355 = vadd.f32 %v2335, %v2345
      %v2356 = vadd.f32 %v2336, %v2345
      %v2357 = vadd.f32 %v2337, %v2345
      %v2358 = vadd.f32 %v2338, %v2345
      %v2359 = vadd.f32 %v2339, %v2345
      %v2360 = vadd.f32 %v2340, %v2345
      %v2361 = vadd.f32 %v2341, %v2345
      %v2362 = vadd.f32 %v2342, %v2345
      %v2363 = vmax.f32 %v2347, 0.0
      %v2364 = vmax.f32 %v2348, 0.0
      %v2365 = vmax.f32 %v2349, 0.0
      %v2366 = vmax.f32 %v2350, 0.0
      %v2367 = vmax.f32 %v2351, 0.0
      %v2368 = vmax.f32 %v2352, 0.0
      %v2369 = vmax.f32 %v2353, 0.0
      %v2370 = vmax.f32 %v2354, 0.0
      %v2371 = vmax.f32 %v2355, 0.0
      %v2372 = vmax.f32 %v2356, 0.0
      %v2373 = vmax.f32 %v2357, 0.0
      %v2374 = vmax.f32 %v2358, 0.0
      %v2375 = vmax.f32 %v2359, 0.0
      %v2376 = vmax.f32 %v2360, 0.0
      %v2377 = vmax.f32 %v2361, 0.0
      %v2378 = vmax.f32 %v2362, 0.0
      %v2379 = vpack.c.bf16 %v2363, %v2363
      %v2380 = vpack.c.bf16 %v2364, %v2364
      %v2381 = vpack.c.bf16 %v2365, %v2365
      %v2382 = vpack.c.bf16 %v2366, %v2366
      %v2383 = vpack.c.bf16 %v2367, %v2367
      %v2384 = vpack.c.bf16 %v2368, %v2368
      %v2385 = vpack.c.bf16 %v2369, %v2369
      %v2386 = vpack.c.bf16 %v2370, %v2370
      %v2387 = vpack.c.bf16 %v2371, %v2371
      %v2388 = vpack.c.bf16 %v2372, %v2372
      %v2389 = vpack.c.bf16 %v2373, %v2373
      %v2390 = vpack.c.bf16 %v2374, %v2374
      %v2391 = vpack.c.bf16 %v2375, %v2375
      %v2392 = vpack.c.bf16 %v2376, %v2376
      %v2393 = vpack.c.bf16 %v2377, %v2377
      %v2394 = vpack.c.bf16 %v2378, %v2378
      %vm2395 = vcmask 60416
      %2396 = vst.msk [vmem:[%s279] sm:$0xf] %vm2395, %v2379
      %2397 = vst.msk [vmem:[%s279 + $0x4] sm:$0xf] %vm2395, %v2380
      %2398 = vst.msk [vmem:[%s279 + $0x8] sm:$0xf] %vm2395, %v2381
      %2399 = vst.msk [vmem:[%s279 + $0xc] sm:$0xf] %vm2395, %v2382
      %2400 = vst.msk [vmem:[%s279 + $0x10] sm:$0xf] %vm2395, %v2383
      %2401 = vst.msk [vmem:[%s279 + $0x14] sm:$0xf] %vm2395, %v2384
      %2402 = vst.msk [vmem:[%s279 + $0x18] sm:$0xf] %vm2395, %v2385
      %2403 = vst.msk [vmem:[%s279 + $0x1c] sm:$0xf] %vm2395, %v2386
      %2404 = vst.msk [vmem:[%s279 + $0x20] sm:$0xf] %vm2395, %v2387
      %2405 = vst.msk [vmem:[%s279 + $0x24] sm:$0xf] %vm2395, %v2388
      %2406 = vst.msk [vmem:[%s279 + $0x28] sm:$0xf] %vm2395, %v2389
      %2407 = vst.msk [vmem:[%s279 + $0x2c] sm:$0xf] %vm2395, %v2390
      %2408 = vst.msk [vmem:[%s279 + $0x30] sm:$0xf] %vm2395, %v2391
      %2409 = vst.msk [vmem:[%s279 + $0x34] sm:$0xf] %vm2395, %v2392
      %2410 = vst.msk [vmem:[%s279 + $0x38] sm:$0xf] %vm2395, %v2393
      %2411 = vst.msk [vmem:[%s279 + $0x3c] sm:$0xf] %vm2395, %v2394
      %s2412 = smul.u32 16, %s22
      %p2413 = scmp.lt.s32.totalorder %s20, 1
      %s2414 = scalar_select %p2413, %s20, 1
      %p2415 = scmp.lt.s32.totalorder %s2412, 31
      %s2416 = scalar_select %p2415, %s2412, 31
      %p2417 = scmp.lt.s32.totalorder %s21, 0
      %s2418 = scalar_select %p2417, %s21, 0
      %s2419 = sadd.s32 %s2418, %s2416
      %s2420 = smul.addr %s2414, 32
      %s2421 = sadd.s32 %s2419, %s2420
      %s2422 = smul.addr %s2421, 4
      %s2423 = scalar_lea.vmem %s4, %s2422
      // Predicated region
      $region37: #{tpu_custom_call.1} parent=35 // pred_check
        %p2424 = pneg %p160
      $region38: #{tpu_custom_call.1} parent=35 // pred_check_branch
        %2426 = sbr.rel (%p2424) target = $region40
      $region39: #{tpu_custom_call.1} parent=35 // pred_region
        %s2427 = smul.u32 16, %s22
      $region40: #{tpu_custom_call.1} parent=35 // pred_fallthru
        _
    $region36: #{tpu_custom_call.1} parent=5 // pred_fallthru
      _
    %p2428 = scmp.le.s32.totalorder 2, %s10
    // Predicated region
    $region41: #{tpu_custom_call.1} parent=5 // pred_check
      %p2429 = pneg %p2428
    $region42: #{tpu_custom_call.1} parent=5 // pred_check_branch
      %2431 = sbr.rel (%p2429) target = $region44
    $region43: #{tpu_custom_call.1} parent=5 // pred_region
      %s2432 = ssub.s32 %s10, 2
      // Predicated region
      $region45: #{tpu_custom_call.1} parent=43 // pred_check
        %p2433 = pneg %p166
      $region46: #{tpu_custom_call.1} parent=43 // pred_check_branch
        %2435 = sbr.rel (%p2433) target = $region48
      $region47: #{tpu_custom_call.1} parent=43 // pred_region
        %s2436 = smul.u32 16, %s25
        %p2437 = scmp.lt.s32.totalorder %s23, 1
        %s2438 = scalar_select %p2437, %s23, 1
        %p2439 = scmp.lt.s32.totalorder %s2436, 31
        %s2440 = scalar_select %p2439, %s2436, 31
        %p2441 = scmp.lt.s32.totalorder %s24, 0
        %s2442 = scalar_select %p2441, %s24, 0
        %s2443 = sadd.s32 %s2442, %s2440
        %s2444 = smul.addr %s2438, 32
        %s2445 = sadd.s32 %s2443, %s2444
        %s2446 = smul.addr %s2445, 4
        %s2447 = scalar_lea.vmem %s4, %s2446
      $region48: #{tpu_custom_call.1} parent=43 // pred_fallthru
        _
    $region44: #{tpu_custom_call.1} parent=5 // pred_fallthru
      _
  $region6: #{tpu_custom_call.1} parent=0 // loop_footer
    %s14 = sadd.s32 1, %s10
  $region7: #{tpu_custom_call.1} parent=0 // loop_footer_branch
    %9 = sbr.rel target = $region3
  $region8: #{tpu_custom_call.1} parent=0 // loop_exit
    _

</llo_original>
